<compile_context>
chip_gen: v7x
topology: tpu7x:2x2x1
jax: 0.10.0
libtpu: 0.0.40
codegen_flags: <defaults>
</compile_context>

<pallas_src>
import jax
import jax.numpy as jnp
from jax.experimental import pallas as pl
from jax.experimental.pallas import tpu as pltpu

N_EMBD = 64
NUM_HEADS = 4
HEAD_SIZE = N_EMBD // NUM_HEADS      # 16
D_HEADS = NUM_HEADS * HEAD_SIZE      # 64


# ---------------------------------------------------------------------------
# Fused kernel: one grid step processes BB batch rows.
# ---------------------------------------------------------------------------
def _mha_fused_kernel(x_ref, wqkv_ref, wpt_ref, bp_ref, o_ref):
    # x_ref    : (BB, T, C)   bf16   current batch-row block
    # wqkv_ref : (C, 3*H*hs)  bf16   pre-transposed, stacked [Q_all | K_all | V_all]
    #                                (1/sqrt(hs) pre-folded into the Q columns)
    # wpt_ref  : (H*hs, E)    bf16   pre-transposed projection weight (Wp^T)
    # bp_ref   : (1, E)       f32    projection bias
    # o_ref    : (BB, T, E)   f32    lane-dense output slab
    BB, T, C = x_ref.shape
    E = o_ref.shape[-1]

    # One wide QKV matmul for all heads and all BB rows (bf16 in, f32 accumulate).
    x2d = x_ref[...].reshape(BB * T, C)                       # leading-dim merge (cheap)
    qkv = jnp.dot(x2d, wqkv_ref[...],
                  preferred_element_type=jnp.float32)         # (BB*T, 3*D)

    # Additive causal bias, built once and reused by every head / batch row.
    row = jax.lax.broadcasted_iota(jnp.int32, (T, T), 0)
    col = jax.lax.broadcasted_iota(jnp.int32, (T, T), 1)
    mask_bias = jnp.where(row >= col, 0.0, -1e30).astype(jnp.float32)  # (T, T)

    # Per-head attention; output projection fused into the loop (lane-dense acc).
    acc = jnp.zeros((BB * T, E), jnp.float32)
    for h in range(NUM_HEADS):                                # static unroll, H = 4
        lo = h * HEAD_SIZE
        hi = lo + HEAD_SIZE
        q = qkv[:, lo:hi].reshape(BB, T, HEAD_SIZE).astype(jnp.bfloat16)
        k = qkv[:, D_HEADS + lo:D_HEADS + hi].reshape(BB, T, HEAD_SIZE).astype(jnp.bfloat16)
        v = qkv[:, 2 * D_HEADS + lo:2 * D_HEADS + hi].reshape(BB, T, HEAD_SIZE).astype(jnp.bfloat16)

        # scores: scale already folded into q's weights; add shared causal bias.
        s = jnp.einsum("bqh,bkh->bqk", q, k,
                       preferred_element_type=jnp.float32) + mask_bias      # (BB, T, T)

        # numerically stable softmax, kept entirely in f32
        m = jnp.max(s, axis=-1, keepdims=True)
        p = jnp.exp(s - m)
        denom = jnp.sum(p, axis=-1, keepdims=True)            # >= 1 (diag is unmasked)
        p = (p * pl.reciprocal(denom, approx=True)).astype(jnp.bfloat16)    # EUP vrcp

        head = jnp.einsum("bqk,bkh->bqh", p, v,
                          preferred_element_type=jnp.float32)               # (BB, T, hs)

        # fused output projection: accumulate into lane-dense (BB*T, E) slab
        acc = acc + jnp.dot(head.reshape(BB * T, HEAD_SIZE).astype(jnp.bfloat16),
                            wpt_ref[lo:hi, :],
                            preferred_element_type=jnp.float32)

    y = acc + bp_ref[...]                                     # bias broadcast (1, E)
    o_ref[...] = y.reshape(BB, T, E).astype(o_ref.dtype)      # single lane-dense store


# ---------------------------------------------------------------------------
# Host-side weight packing — call ONCE at parameter-load time (not inside jit).
# ---------------------------------------------------------------------------
def pack_weights(wq, wk, wv, wp, bp):
    # wq/wk/wv: (H, hs, C)  (PyTorch Linear weight layout, per head)
    # wp      : (E, H*hs)   (PyTorch Linear weight layout)
    # bp      : (E,)
    scale = HEAD_SIZE ** -0.5                    # 0.25 -> exact in bf16, folded into Q

    def to_cols(w):                              # (H, hs, C) -> (C, H*hs)
        return jnp.transpose(w, (2, 0, 1)).reshape(N_EMBD, D_HEADS)

    wqkv = jnp.concatenate(
        [to_cols(wq) * scale, to_cols(wk), to_cols(wv)], axis=1)            # (C, 3D)
    return (wqkv.astype(jnp.bfloat16),
            wp.T.astype(jnp.bfloat16),           # (D, E)
            bp.reshape(1, -1).astype(jnp.float32))


# ---------------------------------------------------------------------------
# Block-batch selection: amortize per-step overhead, respect VMEM on all gens.
# ---------------------------------------------------------------------------
def _choose_block_batch(B, T, C, E):
    D3 = 3 * D_HEADS

    def vmem_bytes(bb):
        x_blk = bb * T * C * 2                   # bf16 input block
        o_blk = bb * T * E * 4                   # f32 output block
        interm = (bb * T * D3 * 4                # qkv
                  + 2 * bb * T * T * 4           # scores + probs (one head live)
                  + bb * T * E * 4               # projection accumulator
                  + bb * T * HEAD_SIZE * 4)      # head output
        return 2 * (x_blk + o_blk) + interm      # 2x: double-buffered pipeline blocks

    budget = 8 * 1024 * 1024                     # conservative; fits v7x 32 MiB scoped default
    best = 1
    for bb in range(1, B + 1):
        if B % bb:
            continue
        if vmem_bytes(bb) > budget:
            continue
        if B >= 4 and B // bb < 4:               # keep grid >= 4 (v7x 2 TCs + pipeline depth)
            continue
        best = bb
    return best


# ---------------------------------------------------------------------------
# Full forward (takes pre-packed weights).
# ---------------------------------------------------------------------------
@jax.jit
def mha_forward(x, wqkv, wpt, bp2):
    B, T, C = x.shape
    E = bp2.shape[-1]
    BB = _choose_block_batch(B, T, C, E)
    x_bf16 = x.astype(jnp.bfloat16)              # halves input DMA bytes

    return pl.pallas_call(
        _mha_fused_kernel,
        out_shape=jax.ShapeDtypeStruct((B, T, E), jnp.float32),
        grid_spec=pltpu.PrefetchScalarGridSpec(
            num_scalar_prefetch=0,
            grid=(B // BB,),
            in_specs=[
                pl.BlockSpec((BB, T, C), lambda b: (b, 0, 0)),
                pl.BlockSpec((C, 3 * D_HEADS), lambda b: (0, 0)),
                pl.BlockSpec((D_HEADS, E), lambda b: (0, 0)),
                pl.BlockSpec((1, E), lambda b: (0, 0)),
            ],
            out_specs=pl.BlockSpec((BB, T, E), lambda b: (b, 0, 0)),
        ),
        compiler_params=pltpu.CompilerParams(
            dimension_semantics=("parallel",),
            vmem_limit_bytes=32 * 1024 * 1024,
        ),
    )(x_bf16, wqkv, wpt, bp2)


# ---------------------------------------------------------------------------
# Pure-JAX f32 reference (original PyTorch weight layout) for sanity checking.
# ---------------------------------------------------------------------------
def reference(x, wq, wk, wv, wp, bp):
    B, T, C = x.shape
    outs = []
    for h in range(NUM_HEADS):
        q = x @ wq[h].T
        k = x @ wk[h].T
        v = x @ wv[h].T
        wei = (q @ jnp.swapaxes(k, -2, -1)) * (HEAD_SIZE ** -0.5)
        mask = jnp.tril(jnp.ones((T, T), dtype=bool))
        wei = jnp.where(mask, wei, -jnp.inf)
        wei = jax.nn.softmax(wei, axis=-1)
        outs.append(wei @ v)
    cat = jnp.concatenate(outs, axis=-1)
    return cat @ wp.T + bp


if __name__ == "__main__":
    key = jax.random.PRNGKey(0)
    kx, kq, kk, kv, kp, kb = jax.random.split(key, 6)

    B, T = 8, 8  # T <= block_size (=128); causal mask uses tril[:T, :T]
    x = jax.random.normal(kx, (B, T, N_EMBD), dtype=jnp.float32)

    # Deterministic parameter init (PyTorch nn.Linear weight layout: (out, in)).
    scale_in = 1.0 / (N_EMBD ** 0.5)
    wq = jax.random.uniform(kq, (NUM_HEADS, HEAD_SIZE, N_EMBD),
                            minval=-scale_in, maxval=scale_in, dtype=jnp.float32)
    wk = jax.random.uniform(kk, (NUM_HEADS, HEAD_SIZE, N_EMBD),
                            minval=-scale_in, maxval=scale_in, dtype=jnp.float32)
    wv = jax.random.uniform(kv, (NUM_HEADS, HEAD_SIZE, N_EMBD),
                            minval=-scale_in, maxval=scale_in, dtype=jnp.float32)
    scale_proj = 1.0 / (D_HEADS ** 0.5)
    wp = jax.random.uniform(kp, (N_EMBD, D_HEADS),
                            minval=-scale_proj, maxval=scale_proj, dtype=jnp.float32)
    bp = jax.random.uniform(kb, (N_EMBD,),
                            minval=-scale_proj, maxval=scale_proj, dtype=jnp.float32)

    # One-time packing at "parameter-load time" (outside the jitted forward).
    wqkv, wpt, bp2 = pack_weights(wq, wk, wv, wp, bp)

    out = mha_forward(x, wqkv, wpt, bp2)
    out = jax.block_until_ready(out)

    ref = reference(x, wq, wk, wv, wp, bp)
    assert out.shape == (B, T, N_EMBD), out.shape
    # bf16 matmul operands + approx reciprocal -> relaxed tolerance vs. f32 reference
    max_err = float(jnp.max(jnp.abs(out - ref)))
    assert jnp.allclose(out, ref, atol=5e-2, rtol=5e-2), max_err

    print("KERNEL_OK")
</pallas_src>

<mosaic_0001>
module attributes {stable_mosaic.version = 11 : i64} {
  func.func @_mha_fused_kernel(%arg0: i32, %arg1: memref<2x8x64xbf16, #tpu.memory_space<vmem>>, %arg2: memref<64x192xbf16, #tpu.memory_space<vmem>>, %arg3: memref<64x64xbf16, #tpu.memory_space<vmem>>, %arg4: memref<1x64xf32, #tpu.memory_space<vmem>>, %arg5: memref<2x8x64xf32, #tpu.memory_space<vmem>>) attributes {dimension_semantics = [#tpu.dimension_semantics<parallel>], iteration_bounds = array<i64: 4>, scalar_prefetch = 0 : i64, scratch_operands = 0 : i64, tpu.core_type = #tpu.core_type<tc>, window_params = [{transform_indices = @transform_0, window_bounds = array<i64: 2, 8, 64>}, {pipeline_mode = #tpu.pipeline_mode<synchronous>, transform_indices = @transform_1, window_bounds = array<i64: 64, 192>}, {pipeline_mode = #tpu.pipeline_mode<synchronous>, transform_indices = @transform_2, window_bounds = array<i64: 64, 64>}, {pipeline_mode = #tpu.pipeline_mode<synchronous>, transform_indices = @transform_3, window_bounds = array<i64: 1, 64>}, {transform_indices = @transform_4, window_bounds = array<i64: 2, 8, 64>}]} {
    %c0 = arith.constant 0 : index
    %c0_0 = arith.constant 0 : index
    %c0_1 = arith.constant 0 : index
    %0 = vector.load %arg1[%c0, %c0_0, %c0_1] : memref<2x8x64xbf16, #tpu.memory_space<vmem>>, vector<2x8x64xbf16>
    %1 = vector.shape_cast %0 : vector<2x8x64xbf16> to vector<16x64xbf16>
    %c0_2 = arith.constant 0 : index
    %c0_3 = arith.constant 0 : index
    %2 = vector.load %arg2[%c0_2, %c0_3] : memref<64x192xbf16, #tpu.memory_space<vmem>>, vector<64x192xbf16>
    %cst = arith.constant dense<0.000000e+00> : vector<16x192xf32>
    %3 = tpu.matmul %1, %2, %cst {dimension_numbers = #tpu.dot_dimension_numbers<[1], [0], [0], [1], [0, 0, 1, 1], [], []>} : vector<16x64xbf16>, vector<64x192xbf16>, vector<16x192xf32> -> vector<16x192xf32>
    %4 = tpu.iota {dimensions = array<i32: 0>} : vector<8x8xi32>
    %5 = tpu.iota {dimensions = array<i32: 1>} : vector<8x8xi32>
    %6 = arith.cmpi sge, %4, %5 : vector<8x8xi32>
    %cst_4 = arith.constant 0.000000e+00 : f32
    %cst_5 = arith.constant -1.000000e+30 : f32
    %7 = vector.broadcast %cst_4 : f32 to vector<8x8xf32>
    %8 = vector.broadcast %cst_5 : f32 to vector<8x8xf32>
    %9 = arith.select %6, %7, %8 : vector<8x8xi1>, vector<8x8xf32>
    %cst_6 = arith.constant 0.000000e+00 : f32
    %10 = vector.broadcast %cst_6 : f32 to vector<16x64xf32>
    %11 = vector.extract_strided_slice %3 {offsets = [0, 0], sizes = [16, 16], strides = [1, 1]} : vector<16x192xf32> to vector<16x16xf32>
    %12 = vector.shape_cast %11 : vector<16x16xf32> to vector<2x8x16xf32>
    %13 = arith.truncf %12 : vector<2x8x16xf32> to vector<2x8x16xbf16>
    %14 = vector.extract_strided_slice %3 {offsets = [0, 64], sizes = [16, 16], strides = [1, 1]} : vector<16x192xf32> to vector<16x16xf32>
    %15 = vector.shape_cast %14 : vector<16x16xf32> to vector<2x8x16xf32>
    %16 = arith.truncf %15 : vector<2x8x16xf32> to vector<2x8x16xbf16>
    %17 = vector.extract_strided_slice %3 {offsets = [0, 128], sizes = [16, 16], strides = [1, 1]} : vector<16x192xf32> to vector<16x16xf32>
    %18 = vector.shape_cast %17 : vector<16x16xf32> to vector<2x8x16xf32>
    %19 = arith.truncf %18 : vector<2x8x16xf32> to vector<2x8x16xbf16>
    "tpu.trace_start"() <{level = 10 : i32, message = "bqh,bkh->bqk"}> : () -> ()
    %cst_7 = arith.constant dense<0.000000e+00> : vector<2x8x8xf32>
    %20 = tpu.matmul %13, %16, %cst_7 {dimension_numbers = #tpu.dot_dimension_numbers<[2], [2], [1], [1], [0, 0, 0, 1, 1, 1], [0], [0]>} : vector<2x8x16xbf16>, vector<2x8x16xbf16>, vector<2x8x8xf32> -> vector<2x8x8xf32>
    "tpu.trace_stop"() : () -> ()
    %21 = vector.shape_cast %9 : vector<8x8xf32> to vector<1x8x8xf32>
    %22 = vector.broadcast %21 : vector<1x8x8xf32> to vector<2x8x8xf32>
    %23 = arith.addf %20, %22 : vector<2x8x8xf32>
    %cst_8 = arith.constant dense<0xFF800000> : vector<2x8xf32>
    %24 = vector.multi_reduction <maximumf>, %23, %cst_8 [2] : vector<2x8x8xf32> to vector<2x8xf32>
    %25 = vector.shape_cast %24 : vector<2x8xf32> to vector<2x8x1xf32>
    %26 = vector.broadcast %25 : vector<2x8x1xf32> to vector<2x8x8xf32>
    %27 = arith.subf %23, %26 : vector<2x8x8xf32>
    %28 = math.exp %27 : vector<2x8x8xf32>
    %cst_9 = arith.constant dense<0.000000e+00> : vector<2x8xf32>
    %29 = vector.multi_reduction <add>, %28, %cst_9 [2] : vector<2x8x8xf32> to vector<2x8xf32>
    %30 = vector.shape_cast %29 : vector<2x8xf32> to vector<2x8x1xf32>
    %31 = tpu.reciprocal %30 {approx = true} : vector<2x8x1xf32> -> vector<2x8x1xf32>
    %32 = vector.broadcast %31 : vector<2x8x1xf32> to vector<2x8x8xf32>
    %33 = arith.mulf %28, %32 : vector<2x8x8xf32>
    %34 = arith.truncf %33 : vector<2x8x8xf32> to vector<2x8x8xbf16>
    "tpu.trace_start"() <{level = 10 : i32, message = "bqk,bkh->bqh"}> : () -> ()
    %cst_10 = arith.constant dense<0.000000e+00> : vector<2x8x16xf32>
    %35 = tpu.matmul %34, %19, %cst_10 {dimension_numbers = #tpu.dot_dimension_numbers<[2], [1], [1], [2], [0, 0, 0, 1, 1, 2], [0], [0]>} : vector<2x8x8xbf16>, vector<2x8x16xbf16>, vector<2x8x16xf32> -> vector<2x8x16xf32>
    "tpu.trace_stop"() : () -> ()
    %36 = vector.shape_cast %35 : vector<2x8x16xf32> to vector<16x16xf32>
    %37 = arith.truncf %36 : vector<16x16xf32> to vector<16x16xbf16>
    %c0_11 = arith.constant 0 : index
    %c0_12 = arith.constant 0 : index
    %38 = vector.load %arg3[%c0_11, %c0_12] : memref<64x64xbf16, #tpu.memory_space<vmem>>, vector<16x64xbf16>
    %cst_13 = arith.constant dense<0.000000e+00> : vector<16x64xf32>
    %39 = tpu.matmul %37, %38, %cst_13 {dimension_numbers = #tpu.dot_dimension_numbers<[1], [0], [0], [1], [0, 0, 1, 1], [], []>} : vector<16x16xbf16>, vector<16x64xbf16>, vector<16x64xf32> -> vector<16x64xf32>
    %40 = arith.addf %10, %39 : vector<16x64xf32>
    %41 = vector.extract_strided_slice %3 {offsets = [0, 16], sizes = [16, 16], strides = [1, 1]} : vector<16x192xf32> to vector<16x16xf32>
    %42 = vector.shape_cast %41 : vector<16x16xf32> to vector<2x8x16xf32>
    %43 = arith.truncf %42 : vector<2x8x16xf32> to vector<2x8x16xbf16>
    %44 = vector.extract_strided_slice %3 {offsets = [0, 80], sizes = [16, 16], strides = [1, 1]} : vector<16x192xf32> to vector<16x16xf32>
    %45 = vector.shape_cast %44 : vector<16x16xf32> to vector<2x8x16xf32>
    %46 = arith.truncf %45 : vector<2x8x16xf32> to vector<2x8x16xbf16>
    %47 = vector.extract_strided_slice %3 {offsets = [0, 144], sizes = [16, 16], strides = [1, 1]} : vector<16x192xf32> to vector<16x16xf32>
    %48 = vector.shape_cast %47 : vector<16x16xf32> to vector<2x8x16xf32>
    %49 = arith.truncf %48 : vector<2x8x16xf32> to vector<2x8x16xbf16>
    "tpu.trace_start"() <{level = 10 : i32, message = "bqh,bkh->bqk"}> : () -> ()
    %cst_14 = arith.constant dense<0.000000e+00> : vector<2x8x8xf32>
    %50 = tpu.matmul %43, %46, %cst_14 {dimension_numbers = #tpu.dot_dimension_numbers<[2], [2], [1], [1], [0, 0, 0, 1, 1, 1], [0], [0]>} : vector<2x8x16xbf16>, vector<2x8x16xbf16>, vector<2x8x8xf32> -> vector<2x8x8xf32>
    "tpu.trace_stop"() : () -> ()
    %51 = vector.shape_cast %9 : vector<8x8xf32> to vector<1x8x8xf32>
    %52 = vector.broadcast %51 : vector<1x8x8xf32> to vector<2x8x8xf32>
    %53 = arith.addf %50, %52 : vector<2x8x8xf32>
    %cst_15 = arith.constant dense<0xFF800000> : vector<2x8xf32>
    %54 = vector.multi_reduction <maximumf>, %53, %cst_15 [2] : vector<2x8x8xf32> to vector<2x8xf32>
    %55 = vector.shape_cast %54 : vector<2x8xf32> to vector<2x8x1xf32>
    %56 = vector.broadcast %55 : vector<2x8x1xf32> to vector<2x8x8xf32>
    %57 = arith.subf %53, %56 : vector<2x8x8xf32>
    %58 = math.exp %57 : vector<2x8x8xf32>
    %cst_16 = arith.constant dense<0.000000e+00> : vector<2x8xf32>
    %59 = vector.multi_reduction <add>, %58, %cst_16 [2] : vector<2x8x8xf32> to vector<2x8xf32>
    %60 = vector.shape_cast %59 : vector<2x8xf32> to vector<2x8x1xf32>
    %61 = tpu.reciprocal %60 {approx = true} : vector<2x8x1xf32> -> vector<2x8x1xf32>
    %62 = vector.broadcast %61 : vector<2x8x1xf32> to vector<2x8x8xf32>
    %63 = arith.mulf %58, %62 : vector<2x8x8xf32>
    %64 = arith.truncf %63 : vector<2x8x8xf32> to vector<2x8x8xbf16>
    "tpu.trace_start"() <{level = 10 : i32, message = "bqk,bkh->bqh"}> : () -> ()
    %cst_17 = arith.constant dense<0.000000e+00> : vector<2x8x16xf32>
    %65 = tpu.matmul %64, %49, %cst_17 {dimension_numbers = #tpu.dot_dimension_numbers<[2], [1], [1], [2], [0, 0, 0, 1, 1, 2], [0], [0]>} : vector<2x8x8xbf16>, vector<2x8x16xbf16>, vector<2x8x16xf32> -> vector<2x8x16xf32>
    "tpu.trace_stop"() : () -> ()
    %66 = vector.shape_cast %65 : vector<2x8x16xf32> to vector<16x16xf32>
    %67 = arith.truncf %66 : vector<16x16xf32> to vector<16x16xbf16>
    %c16 = arith.constant 16 : index
    %c0_18 = arith.constant 0 : index
    %68 = vector.load %arg3[%c16, %c0_18] : memref<64x64xbf16, #tpu.memory_space<vmem>>, vector<16x64xbf16>
    %cst_19 = arith.constant dense<0.000000e+00> : vector<16x64xf32>
    %69 = tpu.matmul %67, %68, %cst_19 {dimension_numbers = #tpu.dot_dimension_numbers<[1], [0], [0], [1], [0, 0, 1, 1], [], []>} : vector<16x16xbf16>, vector<16x64xbf16>, vector<16x64xf32> -> vector<16x64xf32>
    %70 = arith.addf %40, %69 : vector<16x64xf32>
    %71 = vector.extract_strided_slice %3 {offsets = [0, 32], sizes = [16, 16], strides = [1, 1]} : vector<16x192xf32> to vector<16x16xf32>
    %72 = vector.shape_cast %71 : vector<16x16xf32> to vector<2x8x16xf32>
    %73 = arith.truncf %72 : vector<2x8x16xf32> to vector<2x8x16xbf16>
    %74 = vector.extract_strided_slice %3 {offsets = [0, 96], sizes = [16, 16], strides = [1, 1]} : vector<16x192xf32> to vector<16x16xf32>
    %75 = vector.shape_cast %74 : vector<16x16xf32> to vector<2x8x16xf32>
    %76 = arith.truncf %75 : vector<2x8x16xf32> to vector<2x8x16xbf16>
    %77 = vector.extract_strided_slice %3 {offsets = [0, 160], sizes = [16, 16], strides = [1, 1]} : vector<16x192xf32> to vector<16x16xf32>
    %78 = vector.shape_cast %77 : vector<16x16xf32> to vector<2x8x16xf32>
    %79 = arith.truncf %78 : vector<2x8x16xf32> to vector<2x8x16xbf16>
    "tpu.trace_start"() <{level = 10 : i32, message = "bqh,bkh->bqk"}> : () -> ()
    %cst_20 = arith.constant dense<0.000000e+00> : vector<2x8x8xf32>
    %80 = tpu.matmul %73, %76, %cst_20 {dimension_numbers = #tpu.dot_dimension_numbers<[2], [2], [1], [1], [0, 0, 0, 1, 1, 1], [0], [0]>} : vector<2x8x16xbf16>, vector<2x8x16xbf16>, vector<2x8x8xf32> -> vector<2x8x8xf32>
    "tpu.trace_stop"() : () -> ()
    %81 = vector.shape_cast %9 : vector<8x8xf32> to vector<1x8x8xf32>
    %82 = vector.broadcast %81 : vector<1x8x8xf32> to vector<2x8x8xf32>
    %83 = arith.addf %80, %82 : vector<2x8x8xf32>
    %cst_21 = arith.constant dense<0xFF800000> : vector<2x8xf32>
    %84 = vector.multi_reduction <maximumf>, %83, %cst_21 [2] : vector<2x8x8xf32> to vector<2x8xf32>
    %85 = vector.shape_cast %84 : vector<2x8xf32> to vector<2x8x1xf32>
    %86 = vector.broadcast %85 : vector<2x8x1xf32> to vector<2x8x8xf32>
    %87 = arith.subf %83, %86 : vector<2x8x8xf32>
    %88 = math.exp %87 : vector<2x8x8xf32>
    %cst_22 = arith.constant dense<0.000000e+00> : vector<2x8xf32>
    %89 = vector.multi_reduction <add>, %88, %cst_22 [2] : vector<2x8x8xf32> to vector<2x8xf32>
    %90 = vector.shape_cast %89 : vector<2x8xf32> to vector<2x8x1xf32>
    %91 = tpu.reciprocal %90 {approx = true} : vector<2x8x1xf32> -> vector<2x8x1xf32>
    %92 = vector.broadcast %91 : vector<2x8x1xf32> to vector<2x8x8xf32>
    %93 = arith.mulf %88, %92 : vector<2x8x8xf32>
    %94 = arith.truncf %93 : vector<2x8x8xf32> to vector<2x8x8xbf16>
    "tpu.trace_start"() <{level = 10 : i32, message = "bqk,bkh->bqh"}> : () -> ()
    %cst_23 = arith.constant dense<0.000000e+00> : vector<2x8x16xf32>
    %95 = tpu.matmul %94, %79, %cst_23 {dimension_numbers = #tpu.dot_dimension_numbers<[2], [1], [1], [2], [0, 0, 0, 1, 1, 2], [0], [0]>} : vector<2x8x8xbf16>, vector<2x8x16xbf16>, vector<2x8x16xf32> -> vector<2x8x16xf32>
    "tpu.trace_stop"() : () -> ()
    %96 = vector.shape_cast %95 : vector<2x8x16xf32> to vector<16x16xf32>
    %97 = arith.truncf %96 : vector<16x16xf32> to vector<16x16xbf16>
    %c32 = arith.constant 32 : index
    %c0_24 = arith.constant 0 : index
    %98 = vector.load %arg3[%c32, %c0_24] : memref<64x64xbf16, #tpu.memory_space<vmem>>, vector<16x64xbf16>
    %cst_25 = arith.constant dense<0.000000e+00> : vector<16x64xf32>
    %99 = tpu.matmul %97, %98, %cst_25 {dimension_numbers = #tpu.dot_dimension_numbers<[1], [0], [0], [1], [0, 0, 1, 1], [], []>} : vector<16x16xbf16>, vector<16x64xbf16>, vector<16x64xf32> -> vector<16x64xf32>
    %100 = arith.addf %70, %99 : vector<16x64xf32>
    %101 = vector.extract_strided_slice %3 {offsets = [0, 48], sizes = [16, 16], strides = [1, 1]} : vector<16x192xf32> to vector<16x16xf32>
    %102 = vector.shape_cast %101 : vector<16x16xf32> to vector<2x8x16xf32>
    %103 = arith.truncf %102 : vector<2x8x16xf32> to vector<2x8x16xbf16>
    %104 = vector.extract_strided_slice %3 {offsets = [0, 112], sizes = [16, 16], strides = [1, 1]} : vector<16x192xf32> to vector<16x16xf32>
    %105 = vector.shape_cast %104 : vector<16x16xf32> to vector<2x8x16xf32>
    %106 = arith.truncf %105 : vector<2x8x16xf32> to vector<2x8x16xbf16>
    %107 = vector.extract_strided_slice %3 {offsets = [0, 176], sizes = [16, 16], strides = [1, 1]} : vector<16x192xf32> to vector<16x16xf32>
    %108 = vector.shape_cast %107 : vector<16x16xf32> to vector<2x8x16xf32>
    %109 = arith.truncf %108 : vector<2x8x16xf32> to vector<2x8x16xbf16>
    "tpu.trace_start"() <{level = 10 : i32, message = "bqh,bkh->bqk"}> : () -> ()
    %cst_26 = arith.constant dense<0.000000e+00> : vector<2x8x8xf32>
    %110 = tpu.matmul %103, %106, %cst_26 {dimension_numbers = #tpu.dot_dimension_numbers<[2], [2], [1], [1], [0, 0, 0, 1, 1, 1], [0], [0]>} : vector<2x8x16xbf16>, vector<2x8x16xbf16>, vector<2x8x8xf32> -> vector<2x8x8xf32>
    "tpu.trace_stop"() : () -> ()
    %111 = vector.shape_cast %9 : vector<8x8xf32> to vector<1x8x8xf32>
    %112 = vector.broadcast %111 : vector<1x8x8xf32> to vector<2x8x8xf32>
    %113 = arith.addf %110, %112 : vector<2x8x8xf32>
    %cst_27 = arith.constant dense<0xFF800000> : vector<2x8xf32>
    %114 = vector.multi_reduction <maximumf>, %113, %cst_27 [2] : vector<2x8x8xf32> to vector<2x8xf32>
    %115 = vector.shape_cast %114 : vector<2x8xf32> to vector<2x8x1xf32>
    %116 = vector.broadcast %115 : vector<2x8x1xf32> to vector<2x8x8xf32>
    %117 = arith.subf %113, %116 : vector<2x8x8xf32>
    %118 = math.exp %117 : vector<2x8x8xf32>
    %cst_28 = arith.constant dense<0.000000e+00> : vector<2x8xf32>
    %119 = vector.multi_reduction <add>, %118, %cst_28 [2] : vector<2x8x8xf32> to vector<2x8xf32>
    %120 = vector.shape_cast %119 : vector<2x8xf32> to vector<2x8x1xf32>
    %121 = tpu.reciprocal %120 {approx = true} : vector<2x8x1xf32> -> vector<2x8x1xf32>
    %122 = vector.broadcast %121 : vector<2x8x1xf32> to vector<2x8x8xf32>
    %123 = arith.mulf %118, %122 : vector<2x8x8xf32>
    %124 = arith.truncf %123 : vector<2x8x8xf32> to vector<2x8x8xbf16>
    "tpu.trace_start"() <{level = 10 : i32, message = "bqk,bkh->bqh"}> : () -> ()
    %cst_29 = arith.constant dense<0.000000e+00> : vector<2x8x16xf32>
    %125 = tpu.matmul %124, %109, %cst_29 {dimension_numbers = #tpu.dot_dimension_numbers<[2], [1], [1], [2], [0, 0, 0, 1, 1, 2], [0], [0]>} : vector<2x8x8xbf16>, vector<2x8x16xbf16>, vector<2x8x16xf32> -> vector<2x8x16xf32>
    "tpu.trace_stop"() : () -> ()
    %126 = vector.shape_cast %125 : vector<2x8x16xf32> to vector<16x16xf32>
    %127 = arith.truncf %126 : vector<16x16xf32> to vector<16x16xbf16>
    %c48 = arith.constant 48 : index
    %c0_30 = arith.constant 0 : index
    %128 = vector.load %arg3[%c48, %c0_30] : memref<64x64xbf16, #tpu.memory_space<vmem>>, vector<16x64xbf16>
    %cst_31 = arith.constant dense<0.000000e+00> : vector<16x64xf32>
    %129 = tpu.matmul %127, %128, %cst_31 {dimension_numbers = #tpu.dot_dimension_numbers<[1], [0], [0], [1], [0, 0, 1, 1], [], []>} : vector<16x16xbf16>, vector<16x64xbf16>, vector<16x64xf32> -> vector<16x64xf32>
    %130 = arith.addf %100, %129 : vector<16x64xf32>
    %c0_32 = arith.constant 0 : index
    %c0_33 = arith.constant 0 : index
    %131 = vector.load %arg4[%c0_32, %c0_33] : memref<1x64xf32, #tpu.memory_space<vmem>>, vector<1x64xf32>
    %132 = vector.broadcast %131 : vector<1x64xf32> to vector<16x64xf32>
    %133 = arith.addf %130, %132 : vector<16x64xf32>
    %134 = vector.shape_cast %133 : vector<16x64xf32> to vector<2x8x64xf32>
    %c0_34 = arith.constant 0 : index
    %c0_35 = arith.constant 0 : index
    %c0_36 = arith.constant 0 : index
    %135 = vector.load %arg5[%c0_34, %c0_35, %c0_36] : memref<2x8x64xf32, #tpu.memory_space<vmem>>, vector<2x8x64xf32>
    tpu.vector_store %arg5[%c0_34, %c0_35, %c0_36], %134 {strides = array<i32>} : memref<2x8x64xf32, #tpu.memory_space<vmem>>, vector<2x8x64xf32>,
    return
  }
  func.func @transform_0(%arg0: i32) -> (i32, i32, i32) {
    %c0_i32 = arith.constant 0 : i32
    %c0_i32_0 = arith.constant 0 : i32
    %c0_i32_1 = arith.constant 0 : i32
    return %arg0, %c0_i32, %c0_i32_0 : i32, i32, i32
  }
  func.func @transform_1(%arg0: i32) -> (i32, i32) {
    %c0_i32 = arith.constant 0 : i32
    %c0_i32_0 = arith.constant 0 : i32
    %c0_i32_1 = arith.constant 0 : i32
    return %c0_i32, %c0_i32_0 : i32, i32
  }
  func.func @transform_2(%arg0: i32) -> (i32, i32) {
    %c0_i32 = arith.constant 0 : i32
    %c0_i32_0 = arith.constant 0 : i32
    %c0_i32_1 = arith.constant 0 : i32
    return %c0_i32, %c0_i32_0 : i32, i32
  }
  func.func @transform_3(%arg0: i32) -> (i32, i32) {
    %c0_i32 = arith.constant 0 : i32
    %c0_i32_0 = arith.constant 0 : i32
    %c0_i32_1 = arith.constant 0 : i32
    return %c0_i32, %c0_i32_0 : i32, i32
  }
  func.func @transform_4(%arg0: i32) -> (i32, i32, i32) {
    %c0_i32 = arith.constant 0 : i32
    %c0_i32_0 = arith.constant 0 : i32
    %c0_i32_1 = arith.constant 0 : i32
    return %arg0, %c0_i32, %c0_i32_0 : i32, i32, i32
  }
}

</mosaic_0001>

<llo_original>
// kernel: mha_forward.1
$region0: #{mha_forward.1}
  #allocation0 [shape = 'u32[]', space=smem, size = 0x4, offset = 0x4, fixed_abs, tag = 'smem constant byte address 0x4 - core index']
  #allocation1 [shape = 'u32[144,128]{1,0:T(1,128)}', space=vmem, size = 0x12000, scoped, tag = 'internal scratch']
  %s0 = inlined_call_operand.vmem [shape: bf16[8,8,64], index: 0, kind: input, shape index: {}]
  %s1 = inlined_call_operand.vmem [shape: bf16[64,192], index: 1, kind: input, shape index: {}]
  %s2 = inlined_call_operand.vmem [shape: bf16[64,64], index: 2, kind: input, shape index: {}]
  %s3 = inlined_call_operand.vmem [shape: f32[1,64], index: 3, kind: input, shape index: {}]
  %s4 = inlined_call_operand.hbm [shape: f32[8,8,64], index: 4, kind: output, shape index: {}]
  %s5 = sld [smem:[#allocation0]]
  $region49: #{mha_forward.1} parent=0
    _
  %s7 = ssub.s32 1, %s5
  %s8 = scalar_select 0, %s7, %s5
  $region1: #{mha_forward.1} parent=0
    #allocation2 [shape = 'u8[16384]{0}', space=vmem, size = 0x4000, scoped, tag = 'output window, operand 0']
    #allocation3 [shape = 's32[2]{0}', space=sflag, size = 0x8, scoped, tag = 'scoped memory for mha_forward.1']
    %9 = vsyncpa [#allocation3], 0
    %s10 = scalar_lea.sflag [#allocation3], 1
    %11 = vsyncpa %s10, 0
    loop: start=0, step=1, limit=6
    $region2: #{mha_forward.1} parent=1 // loop_pre_header
      _
    $region3: #{mha_forward.1} parent=1 // loop_header
      %s13 = sphi 0, %s17
      %p14 = scmp.ge.s32.totalorder %s13, 6
      %s23 = sphi 0, %s25
      %s26 = sphi 0, %s23
      %s27 = sphi 0, %s26
      %s43 = sphi 0, %s27
      %s47 = sphi 0, %s47
      %s49 = sphi 0, %s47
      %s50 = sphi 0, %s49
      %s64 = sphi 0, %s50
      %s68 = sphi 0, %s68
      %s70 = sphi 0, %s68
      %s71 = sphi 0, %s70
      %s85 = sphi 0, %s71
      %s89 = sphi 0, %s89
      %s91 = sphi 0, %s89
      %s92 = sphi 0, %s91
      %s106 = sphi 0, %s92
      %s112 = sphi 0, %s114
      %s115 = sphi 0, %s112
      %s116 = sphi 0, %s115
      %s132 = sphi 0, %s116
    $region4: #{mha_forward.1} parent=1 // loop_header_branch
      %16 = sbr.rel (%p14) target = $region8
    $region5: #{mha_forward.1} parent=1 // loop_body
      %s18 = ssub.s32 %s13, 1
      %s19 = ssub.s32 %s13, 2
      %s20 = sadd.s32 %s13, 1
      %s21 = ssub.s32 %s13, %s20
      %p22 = scmp.eq.s32.totalorder %s21, 0
      %s24 = sadd.s32 %s23, 1
      %s25 = scalar_select %p22, %s23, %s24
      %p28 = pneg %p22
      %p29 = scmp.eq.s32.totalorder %s13, 3
      %p30 = por %p28, %p29
      %p31 = scmp.ne.s32.totalorder %s23, %s26
      %p32 = scmp.eq.s32.totalorder %s13, 0
      %p33 = por %p31, %p32
      %p34 = scmp.ne.s32.totalorder %s23, %s26
      %p35 = scmp.eq.s32.totalorder %s18, 3
      %p36 = por %p34, %p35
      %p37 = scmp.ne.s32.totalorder %s26, %s27
      %p38 = scmp.eq.s32.totalorder %s18, 0
      %p39 = por %p37, %p38
      %p40 = scmp.ne.s32.totalorder %s26, %s27
      %p41 = scmp.eq.s32.totalorder %s19, 3
      %p42 = por %p40, %p41
      %p44 = scmp.ne.s32.totalorder %s27, %s43
      %p45 = scmp.eq.s32.totalorder %s19, 0
      %p46 = por %p44, %p45
      %s48 = sadd.s32 %s47, 1
      %p51 = scmp.eq.s32.totalorder %s13, 3
      %p52 = scmp.ne.s32.totalorder %s47, %s49
      %p53 = scmp.eq.s32.totalorder %s13, 0
      %p54 = por %p52, %p53
      %p55 = scmp.ne.s32.totalorder %s47, %s49
      %p56 = scmp.eq.s32.totalorder %s18, 3
      %p57 = por %p55, %p56
      %p58 = scmp.ne.s32.totalorder %s49, %s50
      %p59 = scmp.eq.s32.totalorder %s18, 0
      %p60 = por %p58, %p59
      %p61 = scmp.ne.s32.totalorder %s49, %s50
      %p62 = scmp.eq.s32.totalorder %s19, 3
      %p63 = por %p61, %p62
      %p65 = scmp.ne.s32.totalorder %s50, %s64
      %p66 = scmp.eq.s32.totalorder %s19, 0
      %p67 = por %p65, %p66
      %s69 = sadd.s32 %s68, 1
      %p72 = scmp.eq.s32.totalorder %s13, 3
      %p73 = scmp.ne.s32.totalorder %s68, %s70
      %p74 = scmp.eq.s32.totalorder %s13, 0
      %p75 = por %p73, %p74
      %p76 = scmp.ne.s32.totalorder %s68, %s70
      %p77 = scmp.eq.s32.totalorder %s18, 3
      %p78 = por %p76, %p77
      %p79 = scmp.ne.s32.totalorder %s70, %s71
      %p80 = scmp.eq.s32.totalorder %s18, 0
      %p81 = por %p79, %p80
      %p82 = scmp.ne.s32.totalorder %s70, %s71
      %p83 = scmp.eq.s32.totalorder %s19, 3
      %p84 = por %p82, %p83
      %p86 = scmp.ne.s32.totalorder %s71, %s85
      %p87 = scmp.eq.s32.totalorder %s19, 0
      %p88 = por %p86, %p87
      %s90 = sadd.s32 %s89, 1
      %p93 = scmp.eq.s32.totalorder %s13, 3
      %p94 = scmp.ne.s32.totalorder %s89, %s91
      %p95 = scmp.eq.s32.totalorder %s13, 0
      %p96 = por %p94, %p95
      %p97 = scmp.ne.s32.totalorder %s89, %s91
      %p98 = scmp.eq.s32.totalorder %s18, 3
      %p99 = por %p97, %p98
      %p100 = scmp.ne.s32.totalorder %s91, %s92
      %p101 = scmp.eq.s32.totalorder %s18, 0
      %p102 = por %p100, %p101
      %p103 = scmp.ne.s32.totalorder %s91, %s92
      %p104 = scmp.eq.s32.totalorder %s19, 3
      %p105 = por %p103, %p104
      %p107 = scmp.ne.s32.totalorder %s92, %s106
      %p108 = scmp.eq.s32.totalorder %s19, 0
      %p109 = por %p107, %p108
      %s110 = ssub.s32 %s13, %s20
      %p111 = scmp.eq.s32.totalorder %s110, 0
      %s113 = sadd.s32 %s112, 1
      %s114 = scalar_select %p111, %s112, %s113
      %p117 = pneg %p111
      %p118 = scmp.eq.s32.totalorder %s13, 3
      %p119 = por %p117, %p118
      %p120 = scmp.ne.s32.totalorder %s112, %s115
      %p121 = scmp.eq.s32.totalorder %s13, 0
      %p122 = por %p120, %p121
      %p123 = scmp.ne.s32.totalorder %s112, %s115
      %p124 = scmp.eq.s32.totalorder %s18, 3
      %p125 = por %p123, %p124
      %p126 = scmp.ne.s32.totalorder %s115, %s116
      %p127 = scmp.eq.s32.totalorder %s18, 0
      %p128 = por %p126, %p127
      %p129 = scmp.ne.s32.totalorder %s115, %s116
      %p130 = scmp.eq.s32.totalorder %s19, 3
      %p131 = por %p129, %p130
      %p133 = scmp.ne.s32.totalorder %s116, %s132
      %p134 = scmp.eq.s32.totalorder %s19, 0
      %p135 = por %p133, %p134
      %p136 = scmp.le.s32.totalorder 1, %s13
      %p137 = scmp.lt.s32.totalorder %s13, 5
      %p138 = pnand %p136, %p137
      %p139 = pneg %p138
      // Predicated region
      $region9: #{mha_forward.1} parent=5 // pred_check
        _
      $region10: #{mha_forward.1} parent=5 // pred_check_branch
        %141 = sbr.rel (%p138) target = $region12
      $region11: #{mha_forward.1} parent=5 // pred_region
        %s142 = ssub.s32 %s13, 1
        // Predicated region
        $region13: #{mha_forward.1} parent=11 // pred_check
          %p143 = pneg %p60
        $region14: #{mha_forward.1} parent=11 // pred_check_branch
          %145 = sbr.rel (%p143) target = $region16
        $region15: #{mha_forward.1} parent=11 // pred_region
          _
        $region16: #{mha_forward.1} parent=11 // pred_fallthru
          _
        // Predicated region
        $region17: #{mha_forward.1} parent=11 // pred_check
          %p146 = pneg %p81
        $region18: #{mha_forward.1} parent=11 // pred_check_branch
          %148 = sbr.rel (%p146) target = $region20
        $region19: #{mha_forward.1} parent=11 // pred_region
          _
        $region20: #{mha_forward.1} parent=11 // pred_fallthru
          _
        // Predicated region
        $region21: #{mha_forward.1} parent=11 // pred_check
          %p149 = pneg %p102
        $region22: #{mha_forward.1} parent=11 // pred_check_branch
          %151 = sbr.rel (%p149) target = $region24
        $region23: #{mha_forward.1} parent=11 // pred_region
          _
        $region24: #{mha_forward.1} parent=11 // pred_fallthru
          _
      $region12: #{mha_forward.1} parent=5 // pred_fallthru
        _
      %p152 = scmp.lt.s32.totalorder %s13, 4
      // Predicated region
      $region25: #{mha_forward.1} parent=5 // pred_check
        %p153 = pneg %p152
      $region26: #{mha_forward.1} parent=5 // pred_check_branch
        %155 = sbr.rel (%p153) target = $region28
      $region27: #{mha_forward.1} parent=5 // pred_region
        // Predicated region
        $region29: #{mha_forward.1} parent=27 // pred_check
          %p156 = pneg %p33
        $region30: #{mha_forward.1} parent=27 // pred_check_branch
          %158 = sbr.rel (%p156) target = $region32
        $region31: #{mha_forward.1} parent=27 // pred_region
          %s159 = smul.u32 2, %s13
          %p160 = scmp.lt.s32.totalorder %s159, 7
          %s161 = scalar_select %p160, %s159, 7
          %s162 = smul.addr %s161, 4
          %s163 = scalar_lea.vmem %s0, %s162
          %s164 = smul.u32 2, %s13
        $region32: #{mha_forward.1} parent=27 // pred_fallthru
          _
      $region28: #{mha_forward.1} parent=5 // pred_fallthru
        _
      %p165 = scmp.le.s32.totalorder 1, %s13
      %p166 = scmp.lt.s32.totalorder %s13, 5
      %p167 = pnand %p165, %p166
      %p168 = pneg %p167
      // Predicated region
      $region33: #{mha_forward.1} parent=5 // pred_check
        _
      $region34: #{mha_forward.1} parent=5 // pred_check_branch
        %170 = sbr.rel (%p167) target = $region36
      $region35: #{mha_forward.1} parent=5 // pred_region
        %s171 = ssub.s32 %s13, 1
        %s172 = smul.u32 2, %s18
        %p173 = scmp.lt.s32.totalorder %s172, 7
        %s174 = scalar_select %p173, %s172, 7
        %s175 = smul.addr %s174, 4
        %s176 = scalar_lea.vmem %s0, %s175
        %p177 = pneg %p39
        %p178 = pneg %p36
        %p179 = pneg %p60
        %p180 = pneg %p57
        %p181 = pneg %p81
        %p182 = pneg %p78
        %p183 = pneg %p102
        %p184 = pneg %p99
        %p185 = pneg %p128
        %p186 = pneg %p125
        %s187 = sand.u32 %s115, 1
        %s188 = scalar_lea.sflag [#allocation3], %s187
        %s189 = sand.u32 %s115, 1
        %s190 = smul.addr %s189, 16
        %s191 = scalar_lea.vmem [#allocation2], %s190
        %s192 = smul.u32 2, %s18
        %p193 = scmp.lt.s32.totalorder %s192, 7
        %s194 = scalar_select %p193, %s192, 7
        %s195 = smul.addr %s194, 4
        %s196 = scalar_lea.vmem %s0, %s195
        %s197 = smul.u32 2, %s18
        %s198 = smul.u32 2, %s18
        %v200 = vld [vmem:[%s196] sm:$0xf]
        %v201 = vld [vmem:[%s196 + $0x4] sm:$0xf]
        %v202 = vld [vmem:[%s1] sm:$0xff]
        %v203 = vld [vmem:[%s1 + $0x8] sm:$0xff]
        %v204 = vld [vmem:[%s1 + $0x10] sm:$0xff]
        %v205 = vld [vmem:[%s1 + $0x18] sm:$0xff]
        %v206 = vld [vmem:[%s1 + $0x20] sm:$0xff]
        %v207 = vld [vmem:[%s1 + $0x28] sm:$0xff]
        %v208 = vld [vmem:[%s1 + $0x30] sm:$0xff]
        %v209 = vld [vmem:[%s1 + $0x38] sm:$0xff]
        %v212 = vunpack.c.l.b16 %v200
        %v213 = vunpack.c.l.b16 %v201
        %v214 = vpack.c.b16 %v213, %v212
        %v223 = vunpack.c.l.b16 %v202
        %v224 = vunpack.c.h.b16 %v202
        %v225 = vunpack.c.l.b16 %v203
        %v226 = vunpack.c.h.b16 %v203
        %v227 = vunpack.c.l.b16 %v204
        %v228 = vunpack.c.h.b16 %v204
        %v229 = vunpack.c.l.b16 %v205
        %v230 = vunpack.c.h.b16 %v205
        %v231 = vunpack.c.l.b16 %v206
        %v232 = vunpack.c.h.b16 %v206
        %v233 = vunpack.c.l.b16 %v207
        %v234 = vunpack.c.h.b16 %v207
        %v235 = vunpack.c.l.b16 %v208
        %v236 = vunpack.c.h.b16 %v208
        %v237 = vunpack.c.l.b16 %v209
        %v238 = vunpack.c.h.b16 %v209
        %v239 = vpack.c.b16 %v225, %v223
        %v240 = vpack.c.b16 %v226, %v224
        %v241 = vpack.c.b16 %v229, %v227
        %v242 = vpack.c.b16 %v230, %v228
        %v243 = vpack.c.b16 %v233, %v231
        %v244 = vpack.c.b16 %v234, %v232
        %v245 = vpack.c.b16 %v237, %v235
        %v246 = vpack.c.b16 %v238, %v236
        %vm255 = vcmask 523264
        %v257 = vsel %vm255, %v214, 0
        %259 = vmatprep.subr.bf16.mxu0 %v240
        %260 = vmatpush1.bf16.msra.mxu0 %v239
        %261 = vmatprep.subr.bf16.mxu0 %v242
        %262 = vmatpush1.bf16.msra.mxu0 %v241
        %263 = vmatprep.subr.bf16.mxu0 %v244
        %264 = vmatpush1.bf16.msra.mxu0 %v243
        %265 = vmatprep.subr.bf16.mxu0 %v246
        %266 = vmatpush1.bf16.msra.mxu0 %v245
        %267 = vmatprep.subr.bf16.mxu0 0
        %268 = vmatpush1.bf16.msra.mxu0 0
        %269 = vmatprep.subr.bf16.mxu0 0
        %270 = vmatpush1.bf16.msra.mxu0 0
        %271 = vmatprep.subr.bf16.mxu0 0
        %272 = vmatpush1.bf16.msra.mxu0 0
        %273 = vmatprep.subr.bf16.mxu0 0
        %274 = vmatpush1.bf16.msra.mxu0 0
        %275 = vmatprep.subr.bf16.mxu0 0
        %276 = vmatpush1.bf16.msra.mxu0 0
        %277 = vmatprep.subr.bf16.mxu0 0
        %278 = vmatpush1.bf16.msra.mxu0 0
        %279 = vmatprep.subr.bf16.mxu0 0
        %280 = vmatpush1.bf16.msra.mxu0 0
        %281 = vmatprep.subr.bf16.mxu0 0
        %282 = vmatpush1.bf16.msra.mxu0 0
        %283 = vmatprep.subr.bf16.mxu0 0
        %284 = vmatpush1.bf16.msra.mxu0 0
        %285 = vmatprep.subr.bf16.mxu0 0
        %286 = vmatpush1.bf16.msra.mxu0 0
        %287 = vmatprep.subr.bf16.mxu0 0
        %288 = vmatpush1.bf16.msra.mxu0 0
        %289 = vmatprep.subr.bf16.mxu0 0
        %290 = vmatpush1.bf16.msra.mxu0 0
        %291 = vmatprep.mubr.bf16.mxu0 0
        %292 = vmatmul.mubr.bf16.gmra.mrb[0].mxu0 %v257
        %v293 = vpop.f32.mrb[0].mxu0
        %v294 = vadd.f32 0.0, %v293
        %v295 = vpop.f32.mrb[0].mxu0
        %v296 = vadd.f32 0.0, %v295
        %v297 = vpop.f32.mrb[0].mxu0
        %v298 = vadd.f32 0.0, %v297
        %v299 = vpop.f32.mrb[0].mxu0
        %v300 = vadd.f32 0.0, %v299
        %301 = vdwg.mxu0
        %v302 = vlaneseq
        %v303 = vshrl.u32 %v302, 7
        %v304 = vlaneseq
        %v305 = vand.u32 %v304, 127
        %vm306 = vcmp.ge.s32.totalorder %v303, %v305
        %v307 = vsel %vm306, 0.0, -1e+30
        %v308 = vpack.c.bf16 %v294, %v294
        %v309 = vpack.c.bf16 %v298, %v298
        %v310 = vpack.c.bf16 %v296, %v296
        %v311 = vpack.c.bf16 %v300, %v300
        %313 = vrot.lane.b32.xlu0 %v308, 64
        %v314 = vpop.permute.xlu0 %313
        %vm315 = vcmask 130048
        %v317 = vsel %vm315, %v308, 0
        %v320 = vsel %vm315, %v314, 0
        %322 = vmatprep.subr.bf16.mxu0 0
        %323 = vmatpush1.bf16.xpose.msra.mxu0 %v320
        %324 = vmatprep.subr.bf16.mxu0 0
        %325 = vmatpush1.bf16.xpose.msra.mxu0 0
        %326 = vmatprep.subr.bf16.mxu0 0
        %327 = vmatpush1.bf16.xpose.msra.mxu0 0
        %328 = vmatprep.subr.bf16.mxu0 0
        %329 = vmatpush1.bf16.xpose.msra.mxu0 0
        %330 = vmatprep.subr.bf16.mxu0 0
        %331 = vmatpush1.bf16.xpose.msra.mxu0 0
        %332 = vmatprep.subr.bf16.mxu0 0
        %333 = vmatpush1.bf16.xpose.msra.mxu0 0
        %334 = vmatprep.subr.bf16.mxu0 0
        %335 = vmatpush1.bf16.xpose.msra.mxu0 0
        %336 = vmatprep.subr.bf16.mxu0 0
        %337 = vmatpush1.bf16.xpose.msra.mxu0 0
        %338 = vmatprep.subr.bf16.mxu0 0
        %339 = vmatpush1.bf16.xpose.msra.mxu0 0
        %340 = vmatprep.subr.bf16.mxu0 0
        %341 = vmatpush1.bf16.xpose.msra.mxu0 0
        %342 = vmatprep.subr.bf16.mxu0 0
        %343 = vmatpush1.bf16.xpose.msra.mxu0 0
        %344 = vmatprep.subr.bf16.mxu0 0
        %345 = vmatpush1.bf16.xpose.msra.mxu0 0
        %346 = vmatprep.subr.bf16.mxu0 0
        %347 = vmatpush1.bf16.xpose.msra.mxu0 0
        %348 = vmatprep.subr.bf16.mxu0 0
        %349 = vmatpush1.bf16.xpose.msra.mxu0 0
        %350 = vmatprep.subr.bf16.mxu0 0
        %351 = vmatpush1.bf16.xpose.msra.mxu0 0
        %352 = vmatprep.subr.bf16.mxu0 0
        %353 = vmatpush1.bf16.xpose.msra.mxu0 0
        %354 = vmatprep.mubr.bf16.mxu0 0
        %355 = vmatmul.mubr.bf16.gmra.mrb[0].mxu0 %v317
        %v356 = vpop.f32.mrb[0].mxu0
        %v357 = vadd.f32 %v307, %v356
        %v358 = vpop.f32.mrb[0].mxu0
        %v359 = vpop.f32.mrb[0].mxu0
        %v360 = vpop.f32.mrb[0].mxu0
        %361 = vdwg.mxu0
        %363 = vrot.lane.b32.xlu0 %v309, 64
        %v364 = vpop.permute.xlu0 %363
        %v366 = vsel %vm315, %v309, 0
        %v369 = vsel %vm315, %v364, 0
        %371 = vmatprep.subr.bf16.mxu0 0
        %372 = vmatpush1.bf16.xpose.msra.mxu0 %v369
        %373 = vmatprep.subr.bf16.mxu0 0
        %374 = vmatpush1.bf16.xpose.msra.mxu0 0
        %375 = vmatprep.subr.bf16.mxu0 0
        %376 = vmatpush1.bf16.xpose.msra.mxu0 0
        %377 = vmatprep.subr.bf16.mxu0 0
        %378 = vmatpush1.bf16.xpose.msra.mxu0 0
        %379 = vmatprep.subr.bf16.mxu0 0
        %380 = vmatpush1.bf16.xpose.msra.mxu0 0
        %381 = vmatprep.subr.bf16.mxu0 0
        %382 = vmatpush1.bf16.xpose.msra.mxu0 0
        %383 = vmatprep.subr.bf16.mxu0 0
        %384 = vmatpush1.bf16.xpose.msra.mxu0 0
        %385 = vmatprep.subr.bf16.mxu0 0
        %386 = vmatpush1.bf16.xpose.msra.mxu0 0
        %387 = vmatprep.subr.bf16.mxu0 0
        %388 = vmatpush1.bf16.xpose.msra.mxu0 0
        %389 = vmatprep.subr.bf16.mxu0 0
        %390 = vmatpush1.bf16.xpose.msra.mxu0 0
        %391 = vmatprep.subr.bf16.mxu0 0
        %392 = vmatpush1.bf16.xpose.msra.mxu0 0
        %393 = vmatprep.subr.bf16.mxu0 0
        %394 = vmatpush1.bf16.xpose.msra.mxu0 0
        %395 = vmatprep.subr.bf16.mxu0 0
        %396 = vmatpush1.bf16.xpose.msra.mxu0 0
        %397 = vmatprep.subr.bf16.mxu0 0
        %398 = vmatpush1.bf16.xpose.msra.mxu0 0
        %399 = vmatprep.subr.bf16.mxu0 0
        %400 = vmatpush1.bf16.xpose.msra.mxu0 0
        %401 = vmatprep.subr.bf16.mxu0 0
        %402 = vmatpush1.bf16.xpose.msra.mxu0 0
        %403 = vmatprep.mubr.bf16.mxu0 0
        %404 = vmatmul.mubr.bf16.gmra.mrb[0].mxu0 %v366
        %v405 = vpop.f32.mrb[0].mxu0
        %v406 = vadd.f32 %v307, %v405
        %v407 = vpop.f32.mrb[0].mxu0
        %v408 = vpop.f32.mrb[0].mxu0
        %v409 = vpop.f32.mrb[0].mxu0
        %410 = vdwg.mxu0
        %vm411 = vcmask 64512
        %v412 = vsel %vm411, %v357, -inf
        %413 = vmax.xlane.f32.xlu0 %v412
        %v414 = vpop.xlane.xlu0 %413
        %v415 = vsel %vm411, %v406, -inf
        %416 = vmax.xlane.f32.xlu0 %v415
        %v417 = vpop.xlane.xlu0 %416
        %v418 = vsub.f32 %v357, %v414
        %v419 = vsub.f32 %v406, %v417
        %v420 = vmul.f32 %v418, 1.442695
        %v421 = vpow.pop %v420
        %v422 = vmul.f32 %v419, 1.442695
        %v423 = vpow.pop %v422
        %v424 = vsel %vm411, %v421, 0.0
        %425 = vadd.xlane.f32.xlu0 %v424
        %v426 = vpop.xlane.xlu0 %425
        %v427 = vsel %vm411, %v423, 0.0
        %428 = vadd.xlane.f32.xlu0 %v427
        %v429 = vpop.xlane.xlu0 %428
        %v430 = vrcp.pop %v426
        %v431 = vrcp.pop %v429
        %v432 = vmul.f32 %v421, %v430
        %v433 = vmul.f32 %v423, %v431
        %v434 = vpack.c.bf16 %v432, %v432
        %v435 = vpack.c.bf16 %v433, %v433
        %v437 = vsel %vm411, %v434, 0
        %vm439 = vcmask 1043456
        %v441 = vsel %vm439, %v310, 0
        %443 = vmatprep.subr.bf16.mxu0 0
        %444 = vmatpush1.bf16.msra.mxu0 %v441
        %445 = vmatprep.subr.bf16.mxu0 0
        %446 = vmatpush1.bf16.msra.mxu0 0
        %447 = vmatprep.subr.bf16.mxu0 0
        %448 = vmatpush1.bf16.msra.mxu0 0
        %449 = vmatprep.subr.bf16.mxu0 0
        %450 = vmatpush1.bf16.msra.mxu0 0
        %451 = vmatprep.subr.bf16.mxu0 0
        %452 = vmatpush1.bf16.msra.mxu0 0
        %453 = vmatprep.subr.bf16.mxu0 0
        %454 = vmatpush1.bf16.msra.mxu0 0
        %455 = vmatprep.subr.bf16.mxu0 0
        %456 = vmatpush1.bf16.msra.mxu0 0
        %457 = vmatprep.subr.bf16.mxu0 0
        %458 = vmatpush1.bf16.msra.mxu0 0
        %459 = vmatprep.subr.bf16.mxu0 0
        %460 = vmatpush1.bf16.msra.mxu0 0
        %461 = vmatprep.subr.bf16.mxu0 0
        %462 = vmatpush1.bf16.msra.mxu0 0
        %463 = vmatprep.subr.bf16.mxu0 0
        %464 = vmatpush1.bf16.msra.mxu0 0
        %465 = vmatprep.subr.bf16.mxu0 0
        %466 = vmatpush1.bf16.msra.mxu0 0
        %467 = vmatprep.subr.bf16.mxu0 0
        %468 = vmatpush1.bf16.msra.mxu0 0
        %469 = vmatprep.subr.bf16.mxu0 0
        %470 = vmatpush1.bf16.msra.mxu0 0
        %471 = vmatprep.subr.bf16.mxu0 0
        %472 = vmatpush1.bf16.msra.mxu0 0
        %473 = vmatprep.subr.bf16.mxu0 0
        %474 = vmatpush1.bf16.msra.mxu0 0
        %475 = vmatprep.mubr.bf16.mxu0 0
        %476 = vmatmul.mubr.bf16.gmra.mrb[0].mxu0 %v437
        %v477 = vpop.f32.mrb[0].mxu0
        %v478 = vadd.f32 0.0, %v477
        %v479 = vpop.f32.mrb[0].mxu0
        %v480 = vpop.f32.mrb[0].mxu0
        %v481 = vpop.f32.mrb[0].mxu0
        %482 = vdwg.mxu0
        %v484 = vsel %vm411, %v435, 0
        %v487 = vsel %vm439, %v311, 0
        %489 = vmatprep.subr.bf16.mxu0 0
        %490 = vmatpush1.bf16.msra.mxu0 %v487
        %491 = vmatprep.subr.bf16.mxu0 0
        %492 = vmatpush1.bf16.msra.mxu0 0
        %493 = vmatprep.subr.bf16.mxu0 0
        %494 = vmatpush1.bf16.msra.mxu0 0
        %495 = vmatprep.subr.bf16.mxu0 0
        %496 = vmatpush1.bf16.msra.mxu0 0
        %497 = vmatprep.subr.bf16.mxu0 0
        %498 = vmatpush1.bf16.msra.mxu0 0
        %499 = vmatprep.subr.bf16.mxu0 0
        %500 = vmatpush1.bf16.msra.mxu0 0
        %501 = vmatprep.subr.bf16.mxu0 0
        %502 = vmatpush1.bf16.msra.mxu0 0
        %503 = vmatprep.subr.bf16.mxu0 0
        %504 = vmatpush1.bf16.msra.mxu0 0
        %505 = vmatprep.subr.bf16.mxu0 0
        %506 = vmatpush1.bf16.msra.mxu0 0
        %507 = vmatprep.subr.bf16.mxu0 0
        %508 = vmatpush1.bf16.msra.mxu0 0
        %509 = vmatprep.subr.bf16.mxu0 0
        %510 = vmatpush1.bf16.msra.mxu0 0
        %511 = vmatprep.subr.bf16.mxu0 0
        %512 = vmatpush1.bf16.msra.mxu0 0
        %513 = vmatprep.subr.bf16.mxu0 0
        %514 = vmatpush1.bf16.msra.mxu0 0
        %515 = vmatprep.subr.bf16.mxu0 0
        %516 = vmatpush1.bf16.msra.mxu0 0
        %517 = vmatprep.subr.bf16.mxu0 0
        %518 = vmatpush1.bf16.msra.mxu0 0
        %519 = vmatprep.subr.bf16.mxu0 0
        %520 = vmatpush1.bf16.msra.mxu0 0
        %521 = vmatprep.mubr.bf16.mxu0 0
        %522 = vmatmul.mubr.bf16.gmra.mrb[0].mxu0 %v484
        %v523 = vpop.f32.mrb[0].mxu0
        %v524 = vadd.f32 0.0, %v523
        %v525 = vpop.f32.mrb[0].mxu0
        %v526 = vpop.f32.mrb[0].mxu0
        %v527 = vpop.f32.mrb[0].mxu0
        %528 = vdwg.mxu0
        %v529 = vpack.c.bf16 %v524, %v478
        %v530 = vld [vmem:[%s2] sm:$0xf]
        %v531 = vld [vmem:[%s2 + $0x4] sm:$0xf]
        %532 = vrot.lane.b32.xlu0 %v308, 112
        %v533 = vpop.permute.xlu0 %532
        %534 = vrot.lane.b32.xlu0 %v308, 48
        %v535 = vpop.permute.xlu0 %534
        %v537 = vsel %vm315, %v533, 0
        %v540 = vsel %vm315, %v535, 0
        %542 = vmatprep.subr.bf16.mxu0 0
        %543 = vmatpush1.bf16.xpose.msra.mxu0 %v540
        %544 = vmatprep.subr.bf16.mxu0 0
        %545 = vmatpush1.bf16.xpose.msra.mxu0 0
        %546 = vmatprep.subr.bf16.mxu0 0
        %547 = vmatpush1.bf16.xpose.msra.mxu0 0
        %548 = vmatprep.subr.bf16.mxu0 0
        %549 = vmatpush1.bf16.xpose.msra.mxu0 0
        %550 = vmatprep.subr.bf16.mxu0 0
        %551 = vmatpush1.bf16.xpose.msra.mxu0 0
        %552 = vmatprep.subr.bf16.mxu0 0
        %553 = vmatpush1.bf16.xpose.msra.mxu0 0
        %554 = vmatprep.subr.bf16.mxu0 0
        %555 = vmatpush1.bf16.xpose.msra.mxu0 0
        %556 = vmatprep.subr.bf16.mxu0 0
        %557 = vmatpush1.bf16.xpose.msra.mxu0 0
        %558 = vmatprep.subr.bf16.mxu0 0
        %559 = vmatpush1.bf16.xpose.msra.mxu0 0
        %560 = vmatprep.subr.bf16.mxu0 0
        %561 = vmatpush1.bf16.xpose.msra.mxu0 0
        %562 = vmatprep.subr.bf16.mxu0 0
        %563 = vmatpush1.bf16.xpose.msra.mxu0 0
        %564 = vmatprep.subr.bf16.mxu0 0
        %565 = vmatpush1.bf16.xpose.msra.mxu0 0
        %566 = vmatprep.subr.bf16.mxu0 0
        %567 = vmatpush1.bf16.xpose.msra.mxu0 0
        %568 = vmatprep.subr.bf16.mxu0 0
        %569 = vmatpush1.bf16.xpose.msra.mxu0 0
        %570 = vmatprep.subr.bf16.mxu0 0
        %571 = vmatpush1.bf16.xpose.msra.mxu0 0
        %572 = vmatprep.subr.bf16.mxu0 0
        %573 = vmatpush1.bf16.xpose.msra.mxu0 0
        %574 = vmatprep.mubr.bf16.mxu0 0
        %575 = vmatmul.mubr.bf16.gmra.mrb[0].mxu0 %v537
        %v576 = vpop.f32.mrb[0].mxu0
        %v577 = vadd.f32 %v307, %v576
        %v578 = vpop.f32.mrb[0].mxu0
        %v579 = vpop.f32.mrb[0].mxu0
        %v580 = vpop.f32.mrb[0].mxu0
        %581 = vdwg.mxu0
        %582 = vrot.lane.b32.xlu0 %v309, 112
        %v583 = vpop.permute.xlu0 %582
        %584 = vrot.lane.b32.xlu0 %v309, 48
        %v585 = vpop.permute.xlu0 %584
        %v587 = vsel %vm315, %v583, 0
        %v590 = vsel %vm315, %v585, 0
        %592 = vmatprep.subr.bf16.mxu0 0
        %593 = vmatpush1.bf16.xpose.msra.mxu0 %v590
        %594 = vmatprep.subr.bf16.mxu0 0
        %595 = vmatpush1.bf16.xpose.msra.mxu0 0
        %596 = vmatprep.subr.bf16.mxu0 0
        %597 = vmatpush1.bf16.xpose.msra.mxu0 0
        %598 = vmatprep.subr.bf16.mxu0 0
        %599 = vmatpush1.bf16.xpose.msra.mxu0 0
        %600 = vmatprep.subr.bf16.mxu0 0
        %601 = vmatpush1.bf16.xpose.msra.mxu0 0
        %602 = vmatprep.subr.bf16.mxu0 0
        %603 = vmatpush1.bf16.xpose.msra.mxu0 0
        %604 = vmatprep.subr.bf16.mxu0 0
        %605 = vmatpush1.bf16.xpose.msra.mxu0 0
        %606 = vmatprep.subr.bf16.mxu0 0
        %607 = vmatpush1.bf16.xpose.msra.mxu0 0
        %608 = vmatprep.subr.bf16.mxu0 0
        %609 = vmatpush1.bf16.xpose.msra.mxu0 0
        %610 = vmatprep.subr.bf16.mxu0 0
        %611 = vmatpush1.bf16.xpose.msra.mxu0 0
        %612 = vmatprep.subr.bf16.mxu0 0
        %613 = vmatpush1.bf16.xpose.msra.mxu0 0
        %614 = vmatprep.subr.bf16.mxu0 0
        %615 = vmatpush1.bf16.xpose.msra.mxu0 0
        %616 = vmatprep.subr.bf16.mxu0 0
        %617 = vmatpush1.bf16.xpose.msra.mxu0 0
        %618 = vmatprep.subr.bf16.mxu0 0
        %619 = vmatpush1.bf16.xpose.msra.mxu0 0
        %620 = vmatprep.subr.bf16.mxu0 0
        %621 = vmatpush1.bf16.xpose.msra.mxu0 0
        %622 = vmatprep.subr.bf16.mxu0 0
        %623 = vmatpush1.bf16.xpose.msra.mxu0 0
        %624 = vmatprep.mubr.bf16.mxu0 0
        %625 = vmatmul.mubr.bf16.gmra.mrb[0].mxu0 %v587
        %v626 = vpop.f32.mrb[0].mxu0
        %v627 = vadd.f32 %v307, %v626
        %v628 = vpop.f32.mrb[0].mxu0
        %v629 = vpop.f32.mrb[0].mxu0
        %v630 = vpop.f32.mrb[0].mxu0
        %631 = vdwg.mxu0
        %v632 = vsel %vm411, %v577, -inf
        %633 = vmax.xlane.f32.xlu0 %v632
        %v634 = vpop.xlane.xlu0 %633
        %v635 = vsel %vm411, %v627, -inf
        %636 = vmax.xlane.f32.xlu0 %v635
        %v637 = vpop.xlane.xlu0 %636
        %v638 = vsub.f32 %v577, %v634
        %v639 = vsub.f32 %v627, %v637
        %v640 = vmul.f32 %v638, 1.442695
        %v641 = vpow.pop %v640
        %v642 = vmul.f32 %v639, 1.442695
        %v643 = vpow.pop %v642
        %v644 = vsel %vm411, %v641, 0.0
        %645 = vadd.xlane.f32.xlu0 %v644
        %v646 = vpop.xlane.xlu0 %645
        %v647 = vsel %vm411, %v643, 0.0
        %648 = vadd.xlane.f32.xlu0 %v647
        %v649 = vpop.xlane.xlu0 %648
        %v650 = vrcp.pop %v646
        %v651 = vrcp.pop %v649
        %v652 = vmul.f32 %v641, %v650
        %v653 = vmul.f32 %v643, %v651
        %v654 = vpack.c.bf16 %v652, %v652
        %v655 = vpack.c.bf16 %v653, %v653
        %657 = vrot.lane.b32.xlu0 %v310, 112
        %v658 = vpop.permute.xlu0 %657
        %v660 = vsel %vm411, %v654, 0
        %v663 = vsel %vm439, %v658, 0
        %665 = vmatprep.subr.bf16.mxu0 0
        %666 = vmatpush1.bf16.msra.mxu0 %v663
        %667 = vmatprep.subr.bf16.mxu0 0
        %668 = vmatpush1.bf16.msra.mxu0 0
        %669 = vmatprep.subr.bf16.mxu0 0
        %670 = vmatpush1.bf16.msra.mxu0 0
        %671 = vmatprep.subr.bf16.mxu0 0
        %672 = vmatpush1.bf16.msra.mxu0 0
        %673 = vmatprep.subr.bf16.mxu0 0
        %674 = vmatpush1.bf16.msra.mxu0 0
        %675 = vmatprep.subr.bf16.mxu0 0
        %676 = vmatpush1.bf16.msra.mxu0 0
        %677 = vmatprep.subr.bf16.mxu0 0
        %678 = vmatpush1.bf16.msra.mxu0 0
        %679 = vmatprep.subr.bf16.mxu0 0
        %680 = vmatpush1.bf16.msra.mxu0 0
        %681 = vmatprep.subr.bf16.mxu0 0
        %682 = vmatpush1.bf16.msra.mxu0 0
        %683 = vmatprep.subr.bf16.mxu0 0
        %684 = vmatpush1.bf16.msra.mxu0 0
        %685 = vmatprep.subr.bf16.mxu0 0
        %686 = vmatpush1.bf16.msra.mxu0 0
        %687 = vmatprep.subr.bf16.mxu0 0
        %688 = vmatpush1.bf16.msra.mxu0 0
        %689 = vmatprep.subr.bf16.mxu0 0
        %690 = vmatpush1.bf16.msra.mxu0 0
        %691 = vmatprep.subr.bf16.mxu0 0
        %692 = vmatpush1.bf16.msra.mxu0 0
        %693 = vmatprep.subr.bf16.mxu0 0
        %694 = vmatpush1.bf16.msra.mxu0 0
        %695 = vmatprep.subr.bf16.mxu0 0
        %696 = vmatpush1.bf16.msra.mxu0 0
        %697 = vmatprep.mubr.bf16.mxu0 0
        %698 = vmatmul.mubr.bf16.gmra.mrb[0].mxu0 %v660
        %v699 = vpop.f32.mrb[0].mxu0
        %v700 = vadd.f32 0.0, %v699
        %v701 = vpop.f32.mrb[0].mxu0
        %v702 = vpop.f32.mrb[0].mxu0
        %v703 = vpop.f32.mrb[0].mxu0
        %704 = vdwg.mxu0
        %706 = vrot.lane.b32.xlu0 %v311, 112
        %v707 = vpop.permute.xlu0 %706
        %v709 = vsel %vm411, %v655, 0
        %v712 = vsel %vm439, %v707, 0
        %714 = vmatprep.subr.bf16.mxu0 0
        %715 = vmatpush1.bf16.msra.mxu0 %v712
        %716 = vmatprep.subr.bf16.mxu0 0
        %717 = vmatpush1.bf16.msra.mxu0 0
        %718 = vmatprep.subr.bf16.mxu0 0
        %719 = vmatpush1.bf16.msra.mxu0 0
        %720 = vmatprep.subr.bf16.mxu0 0
        %721 = vmatpush1.bf16.msra.mxu0 0
        %722 = vmatprep.subr.bf16.mxu0 0
        %723 = vmatpush1.bf16.msra.mxu0 0
        %724 = vmatprep.subr.bf16.mxu0 0
        %725 = vmatpush1.bf16.msra.mxu0 0
        %726 = vmatprep.subr.bf16.mxu0 0
        %727 = vmatpush1.bf16.msra.mxu0 0
        %728 = vmatprep.subr.bf16.mxu0 0
        %729 = vmatpush1.bf16.msra.mxu0 0
        %730 = vmatprep.subr.bf16.mxu0 0
        %731 = vmatpush1.bf16.msra.mxu0 0
        %732 = vmatprep.subr.bf16.mxu0 0
        %733 = vmatpush1.bf16.msra.mxu0 0
        %734 = vmatprep.subr.bf16.mxu0 0
        %735 = vmatpush1.bf16.msra.mxu0 0
        %736 = vmatprep.subr.bf16.mxu0 0
        %737 = vmatpush1.bf16.msra.mxu0 0
        %738 = vmatprep.subr.bf16.mxu0 0
        %739 = vmatpush1.bf16.msra.mxu0 0
        %740 = vmatprep.subr.bf16.mxu0 0
        %741 = vmatpush1.bf16.msra.mxu0 0
        %742 = vmatprep.subr.bf16.mxu0 0
        %743 = vmatpush1.bf16.msra.mxu0 0
        %744 = vmatprep.subr.bf16.mxu0 0
        %745 = vmatpush1.bf16.msra.mxu0 0
        %746 = vmatprep.mubr.bf16.mxu0 0
        %747 = vmatmul.mubr.bf16.gmra.mrb[0].mxu0 %v709
        %v748 = vpop.f32.mrb[0].mxu0
        %v749 = vadd.f32 0.0, %v748
        %v750 = vpop.f32.mrb[0].mxu0
        %v751 = vpop.f32.mrb[0].mxu0
        %v752 = vpop.f32.mrb[0].mxu0
        %753 = vdwg.mxu0
        %v754 = vpack.c.bf16 %v749, %v700
        %v755 = vld [vmem:[%s2 + $0x8] sm:$0xf]
        %v756 = vld [vmem:[%s2 + $0xc] sm:$0xf]
        %v759 = vunpack.c.l.b16 %v755
        %v760 = vunpack.c.l.b16 %v756
        %v761 = vpack.c.b16 %v760, %v759
        %v764 = vsel %vm315, %v754, 0
        %766 = vmatprep.subr.bf16.mxu0 0
        %767 = vmatpush1.bf16.msra.mxu0 %v761
        %768 = vmatprep.subr.bf16.mxu0 0
        %769 = vmatpush1.bf16.msra.mxu0 0
        %770 = vmatprep.subr.bf16.mxu0 0
        %771 = vmatpush1.bf16.msra.mxu0 0
        %772 = vmatprep.subr.bf16.mxu0 0
        %773 = vmatpush1.bf16.msra.mxu0 0
        %774 = vmatprep.subr.bf16.mxu0 0
        %775 = vmatpush1.bf16.msra.mxu0 0
        %776 = vmatprep.subr.bf16.mxu0 0
        %777 = vmatpush1.bf16.msra.mxu0 0
        %778 = vmatprep.subr.bf16.mxu0 0
        %779 = vmatpush1.bf16.msra.mxu0 0
        %780 = vmatprep.subr.bf16.mxu0 0
        %781 = vmatpush1.bf16.msra.mxu0 0
        %782 = vmatprep.subr.bf16.mxu0 0
        %783 = vmatpush1.bf16.msra.mxu0 0
        %784 = vmatprep.subr.bf16.mxu0 0
        %785 = vmatpush1.bf16.msra.mxu0 0
        %786 = vmatprep.subr.bf16.mxu0 0
        %787 = vmatpush1.bf16.msra.mxu0 0
        %788 = vmatprep.subr.bf16.mxu0 0
        %789 = vmatpush1.bf16.msra.mxu0 0
        %790 = vmatprep.subr.bf16.mxu0 0
        %791 = vmatpush1.bf16.msra.mxu0 0
        %792 = vmatprep.subr.bf16.mxu0 0
        %793 = vmatpush1.bf16.msra.mxu0 0
        %794 = vmatprep.subr.bf16.mxu0 0
        %795 = vmatpush1.bf16.msra.mxu0 0
        %796 = vmatprep.subr.bf16.mxu0 0
        %797 = vmatpush1.bf16.msra.mxu0 0
        %798 = vmatprep.mubr.bf16.mxu0 0
        %799 = vmatmul.mubr.bf16.gmra.mrb[0].mxu0 %v764
        %v800 = vpop.f32.mrb[0].mxu0
        %v801 = vadd.f32 0.0, %v800
        %v802 = vpop.f32.mrb[0].mxu0
        %v803 = vpop.f32.mrb[0].mxu0
        %v804 = vadd.f32 0.0, %v803
        %v805 = vpop.f32.mrb[0].mxu0
        %806 = vdwg.mxu0
        %v809 = vunpack.c.l.b16 %v530
        %v810 = vunpack.c.l.b16 %v531
        %v811 = vpack.c.b16 %v810, %v809
        %v814 = vsel %vm315, %v529, 0
        %816 = vmatprep.subr.bf16.mxu0 0
        %817 = vmatpush1.bf16.msra.mxu0 %v811
        %818 = vmatprep.subr.bf16.mxu0 0
        %819 = vmatpush1.bf16.msra.mxu0 0
        %820 = vmatprep.subr.bf16.mxu0 0
        %821 = vmatpush1.bf16.msra.mxu0 0
        %822 = vmatprep.subr.bf16.mxu0 0
        %823 = vmatpush1.bf16.msra.mxu0 0
        %824 = vmatprep.subr.bf16.mxu0 0
        %825 = vmatpush1.bf16.msra.mxu0 0
        %826 = vmatprep.subr.bf16.mxu0 0
        %827 = vmatpush1.bf16.msra.mxu0 0
        %828 = vmatprep.subr.bf16.mxu0 0
        %829 = vmatpush1.bf16.msra.mxu0 0
        %830 = vmatprep.subr.bf16.mxu0 0
        %831 = vmatpush1.bf16.msra.mxu0 0
        %832 = vmatprep.subr.bf16.mxu0 0
        %833 = vmatpush1.bf16.msra.mxu0 0
        %834 = vmatprep.subr.bf16.mxu0 0
        %835 = vmatpush1.bf16.msra.mxu0 0
        %836 = vmatprep.subr.bf16.mxu0 0
        %837 = vmatpush1.bf16.msra.mxu0 0
        %838 = vmatprep.subr.bf16.mxu0 0
        %839 = vmatpush1.bf16.msra.mxu0 0
        %840 = vmatprep.subr.bf16.mxu0 0
        %841 = vmatpush1.bf16.msra.mxu0 0
        %842 = vmatprep.subr.bf16.mxu0 0
        %843 = vmatpush1.bf16.msra.mxu0 0
        %844 = vmatprep.subr.bf16.mxu0 0
        %845 = vmatpush1.bf16.msra.mxu0 0
        %846 = vmatprep.subr.bf16.mxu0 0
        %847 = vmatpush1.bf16.msra.mxu0 0
        %848 = vmatprep.mubr.bf16.mxu0 0
        %849 = vmatmul.mubr.bf16.gmra.mrb[0].mxu0 %v814
        %v850 = vpop.f32.mrb[0].mxu0
        %v851 = vadd.f32 %v801, %v850
        %v852 = vpop.f32.mrb[0].mxu0
        %v853 = vpop.f32.mrb[0].mxu0
        %v854 = vadd.f32 %v804, %v853
        %v855 = vpop.f32.mrb[0].mxu0
        %856 = vdwg.mxu0
        %857 = vrot.lane.b32.xlu0 %v308, 96
        %v858 = vpop.permute.xlu0 %857
        %859 = vrot.lane.b32.xlu0 %v308, 32
        %v860 = vpop.permute.xlu0 %859
        %v862 = vsel %vm315, %v858, 0
        %v865 = vsel %vm315, %v860, 0
        %867 = vmatprep.subr.bf16.mxu0 0
        %868 = vmatpush1.bf16.xpose.msra.mxu0 %v865
        %869 = vmatprep.subr.bf16.mxu0 0
        %870 = vmatpush1.bf16.xpose.msra.mxu0 0
        %871 = vmatprep.subr.bf16.mxu0 0
        %872 = vmatpush1.bf16.xpose.msra.mxu0 0
        %873 = vmatprep.subr.bf16.mxu0 0
        %874 = vmatpush1.bf16.xpose.msra.mxu0 0
        %875 = vmatprep.subr.bf16.mxu0 0
        %876 = vmatpush1.bf16.xpose.msra.mxu0 0
        %877 = vmatprep.subr.bf16.mxu0 0
        %878 = vmatpush1.bf16.xpose.msra.mxu0 0
        %879 = vmatprep.subr.bf16.mxu0 0
        %880 = vmatpush1.bf16.xpose.msra.mxu0 0
        %881 = vmatprep.subr.bf16.mxu0 0
        %882 = vmatpush1.bf16.xpose.msra.mxu0 0
        %883 = vmatprep.subr.bf16.mxu0 0
        %884 = vmatpush1.bf16.xpose.msra.mxu0 0
        %885 = vmatprep.subr.bf16.mxu0 0
        %886 = vmatpush1.bf16.xpose.msra.mxu0 0
        %887 = vmatprep.subr.bf16.mxu0 0
        %888 = vmatpush1.bf16.xpose.msra.mxu0 0
        %889 = vmatprep.subr.bf16.mxu0 0
        %890 = vmatpush1.bf16.xpose.msra.mxu0 0
        %891 = vmatprep.subr.bf16.mxu0 0
        %892 = vmatpush1.bf16.xpose.msra.mxu0 0
        %893 = vmatprep.subr.bf16.mxu0 0
        %894 = vmatpush1.bf16.xpose.msra.mxu0 0
        %895 = vmatprep.subr.bf16.mxu0 0
        %896 = vmatpush1.bf16.xpose.msra.mxu0 0
        %897 = vmatprep.subr.bf16.mxu0 0
        %898 = vmatpush1.bf16.xpose.msra.mxu0 0
        %899 = vmatprep.mubr.bf16.mxu0 0
        %900 = vmatmul.mubr.bf16.gmra.mrb[0].mxu0 %v862
        %v901 = vpop.f32.mrb[0].mxu0
        %v902 = vadd.f32 %v307, %v901
        %v903 = vpop.f32.mrb[0].mxu0
        %v904 = vpop.f32.mrb[0].mxu0
        %v905 = vpop.f32.mrb[0].mxu0
        %906 = vdwg.mxu0
        %907 = vrot.lane.b32.xlu0 %v309, 96
        %v908 = vpop.permute.xlu0 %907
        %909 = vrot.lane.b32.xlu0 %v309, 32
        %v910 = vpop.permute.xlu0 %909
        %v912 = vsel %vm315, %v908, 0
        %v915 = vsel %vm315, %v910, 0
        %917 = vmatprep.subr.bf16.mxu0 0
        %918 = vmatpush1.bf16.xpose.msra.mxu0 %v915
        %919 = vmatprep.subr.bf16.mxu0 0
        %920 = vmatpush1.bf16.xpose.msra.mxu0 0
        %921 = vmatprep.subr.bf16.mxu0 0
        %922 = vmatpush1.bf16.xpose.msra.mxu0 0
        %923 = vmatprep.subr.bf16.mxu0 0
        %924 = vmatpush1.bf16.xpose.msra.mxu0 0
        %925 = vmatprep.subr.bf16.mxu0 0
        %926 = vmatpush1.bf16.xpose.msra.mxu0 0
        %927 = vmatprep.subr.bf16.mxu0 0
        %928 = vmatpush1.bf16.xpose.msra.mxu0 0
        %929 = vmatprep.subr.bf16.mxu0 0
        %930 = vmatpush1.bf16.xpose.msra.mxu0 0
        %931 = vmatprep.subr.bf16.mxu0 0
        %932 = vmatpush1.bf16.xpose.msra.mxu0 0
        %933 = vmatprep.subr.bf16.mxu0 0
        %934 = vmatpush1.bf16.xpose.msra.mxu0 0
        %935 = vmatprep.subr.bf16.mxu0 0
        %936 = vmatpush1.bf16.xpose.msra.mxu0 0
        %937 = vmatprep.subr.bf16.mxu0 0
        %938 = vmatpush1.bf16.xpose.msra.mxu0 0
        %939 = vmatprep.subr.bf16.mxu0 0
        %940 = vmatpush1.bf16.xpose.msra.mxu0 0
        %941 = vmatprep.subr.bf16.mxu0 0
        %942 = vmatpush1.bf16.xpose.msra.mxu0 0
        %943 = vmatprep.subr.bf16.mxu0 0
        %944 = vmatpush1.bf16.xpose.msra.mxu0 0
        %945 = vmatprep.subr.bf16.mxu0 0
        %946 = vmatpush1.bf16.xpose.msra.mxu0 0
        %947 = vmatprep.subr.bf16.mxu0 0
        %948 = vmatpush1.bf16.xpose.msra.mxu0 0
        %949 = vmatprep.mubr.bf16.mxu0 0
        %950 = vmatmul.mubr.bf16.gmra.mrb[0].mxu0 %v912
        %v951 = vpop.f32.mrb[0].mxu0
        %v952 = vadd.f32 %v307, %v951
        %v953 = vpop.f32.mrb[0].mxu0
        %v954 = vpop.f32.mrb[0].mxu0
        %v955 = vpop.f32.mrb[0].mxu0
        %956 = vdwg.mxu0
        %v957 = vsel %vm411, %v902, -inf
        %958 = vmax.xlane.f32.xlu0 %v957
        %v959 = vpop.xlane.xlu0 %958
        %v960 = vsel %vm411, %v952, -inf
        %961 = vmax.xlane.f32.xlu0 %v960
        %v962 = vpop.xlane.xlu0 %961
        %v963 = vsub.f32 %v902, %v959
        %v964 = vsub.f32 %v952, %v962
        %v965 = vmul.f32 %v963, 1.442695
        %v966 = vpow.pop %v965
        %v967 = vmul.f32 %v964, 1.442695
        %v968 = vpow.pop %v967
        %v969 = vsel %vm411, %v966, 0.0
        %970 = vadd.xlane.f32.xlu0 %v969
        %v971 = vpop.xlane.xlu0 %970
        %v972 = vsel %vm411, %v968, 0.0
        %973 = vadd.xlane.f32.xlu0 %v972
        %v974 = vpop.xlane.xlu0 %973
        %v975 = vrcp.pop %v971
        %v976 = vrcp.pop %v974
        %v977 = vmul.f32 %v966, %v975
        %v978 = vmul.f32 %v968, %v976
        %v979 = vpack.c.bf16 %v977, %v977
        %v980 = vpack.c.bf16 %v978, %v978
        %981 = vrot.lane.b32.xlu0 %v310, 96
        %v982 = vpop.permute.xlu0 %981
        %v984 = vsel %vm411, %v979, 0
        %v987 = vsel %vm439, %v982, 0
        %989 = vmatprep.subr.bf16.mxu0 0
        %990 = vmatpush1.bf16.msra.mxu0 %v987
        %991 = vmatprep.subr.bf16.mxu0 0
        %992 = vmatpush1.bf16.msra.mxu0 0
        %993 = vmatprep.subr.bf16.mxu0 0
        %994 = vmatpush1.bf16.msra.mxu0 0
        %995 = vmatprep.subr.bf16.mxu0 0
        %996 = vmatpush1.bf16.msra.mxu0 0
        %997 = vmatprep.subr.bf16.mxu0 0
        %998 = vmatpush1.bf16.msra.mxu0 0
        %999 = vmatprep.subr.bf16.mxu0 0
        %1000 = vmatpush1.bf16.msra.mxu0 0
        %1001 = vmatprep.subr.bf16.mxu0 0
        %1002 = vmatpush1.bf16.msra.mxu0 0
        %1003 = vmatprep.subr.bf16.mxu0 0
        %1004 = vmatpush1.bf16.msra.mxu0 0
        %1005 = vmatprep.subr.bf16.mxu0 0
        %1006 = vmatpush1.bf16.msra.mxu0 0
        %1007 = vmatprep.subr.bf16.mxu0 0
        %1008 = vmatpush1.bf16.msra.mxu0 0
        %1009 = vmatprep.subr.bf16.mxu0 0
        %1010 = vmatpush1.bf16.msra.mxu0 0
        %1011 = vmatprep.subr.bf16.mxu0 0
        %1012 = vmatpush1.bf16.msra.mxu0 0
        %1013 = vmatprep.subr.bf16.mxu0 0
        %1014 = vmatpush1.bf16.msra.mxu0 0
        %1015 = vmatprep.subr.bf16.mxu0 0
        %1016 = vmatpush1.bf16.msra.mxu0 0
        %1017 = vmatprep.subr.bf16.mxu0 0
        %1018 = vmatpush1.bf16.msra.mxu0 0
        %1019 = vmatprep.subr.bf16.mxu0 0
        %1020 = vmatpush1.bf16.msra.mxu0 0
        %1021 = vmatprep.mubr.bf16.mxu0 0
        %1022 = vmatmul.mubr.bf16.gmra.mrb[0].mxu0 %v984
        %v1023 = vpop.f32.mrb[0].mxu0
        %v1024 = vadd.f32 0.0, %v1023
        %v1025 = vpop.f32.mrb[0].mxu0
        %v1026 = vpop.f32.mrb[0].mxu0
        %v1027 = vpop.f32.mrb[0].mxu0
        %1028 = vdwg.mxu0
        %1029 = vrot.lane.b32.xlu0 %v311, 96
        %v1030 = vpop.permute.xlu0 %1029
        %v1032 = vsel %vm411, %v980, 0
        %v1035 = vsel %vm439, %v1030, 0
        %1037 = vmatprep.subr.bf16.mxu0 0
        %1038 = vmatpush1.bf16.msra.mxu0 %v1035
        %1039 = vmatprep.subr.bf16.mxu0 0
        %1040 = vmatpush1.bf16.msra.mxu0 0
        %1041 = vmatprep.subr.bf16.mxu0 0
        %1042 = vmatpush1.bf16.msra.mxu0 0
        %1043 = vmatprep.subr.bf16.mxu0 0
        %1044 = vmatpush1.bf16.msra.mxu0 0
        %1045 = vmatprep.subr.bf16.mxu0 0
        %1046 = vmatpush1.bf16.msra.mxu0 0
        %1047 = vmatprep.subr.bf16.mxu0 0
        %1048 = vmatpush1.bf16.msra.mxu0 0
        %1049 = vmatprep.subr.bf16.mxu0 0
        %1050 = vmatpush1.bf16.msra.mxu0 0
        %1051 = vmatprep.subr.bf16.mxu0 0
        %1052 = vmatpush1.bf16.msra.mxu0 0
        %1053 = vmatprep.subr.bf16.mxu0 0
        %1054 = vmatpush1.bf16.msra.mxu0 0
        %1055 = vmatprep.subr.bf16.mxu0 0
        %1056 = vmatpush1.bf16.msra.mxu0 0
        %1057 = vmatprep.subr.bf16.mxu0 0
        %1058 = vmatpush1.bf16.msra.mxu0 0
        %1059 = vmatprep.subr.bf16.mxu0 0
        %1060 = vmatpush1.bf16.msra.mxu0 0
        %1061 = vmatprep.subr.bf16.mxu0 0
        %1062 = vmatpush1.bf16.msra.mxu0 0
        %1063 = vmatprep.subr.bf16.mxu0 0
        %1064 = vmatpush1.bf16.msra.mxu0 0
        %1065 = vmatprep.subr.bf16.mxu0 0
        %1066 = vmatpush1.bf16.msra.mxu0 0
        %1067 = vmatprep.subr.bf16.mxu0 0
        %1068 = vmatpush1.bf16.msra.mxu0 0
        %1069 = vmatprep.mubr.bf16.mxu0 0
        %1070 = vmatmul.mubr.bf16.gmra.mrb[0].mxu0 %v1032
        %v1071 = vpop.f32.mrb[0].mxu0
        %v1072 = vadd.f32 0.0, %v1071
        %v1073 = vpop.f32.mrb[0].mxu0
        %v1074 = vpop.f32.mrb[0].mxu0
        %v1075 = vpop.f32.mrb[0].mxu0
        %1076 = vdwg.mxu0
        %v1077 = vpack.c.bf16 %v1072, %v1024
        %v1078 = vld [vmem:[%s2 + $0x10] sm:$0xf]
        %v1079 = vld [vmem:[%s2 + $0x14] sm:$0xf]
        %v1082 = vunpack.c.l.b16 %v1078
        %v1083 = vunpack.c.l.b16 %v1079
        %v1084 = vpack.c.b16 %v1083, %v1082
        %v1087 = vsel %vm315, %v1077, 0
        %1089 = vmatprep.subr.bf16.mxu0 0
        %1090 = vmatpush1.bf16.msra.mxu0 %v1084
        %1091 = vmatprep.subr.bf16.mxu0 0
        %1092 = vmatpush1.bf16.msra.mxu0 0
        %1093 = vmatprep.subr.bf16.mxu0 0
        %1094 = vmatpush1.bf16.msra.mxu0 0
        %1095 = vmatprep.subr.bf16.mxu0 0
        %1096 = vmatpush1.bf16.msra.mxu0 0
        %1097 = vmatprep.subr.bf16.mxu0 0
        %1098 = vmatpush1.bf16.msra.mxu0 0
        %1099 = vmatprep.subr.bf16.mxu0 0
        %1100 = vmatpush1.bf16.msra.mxu0 0
        %1101 = vmatprep.subr.bf16.mxu0 0
        %1102 = vmatpush1.bf16.msra.mxu0 0
        %1103 = vmatprep.subr.bf16.mxu0 0
        %1104 = vmatpush1.bf16.msra.mxu0 0
        %1105 = vmatprep.subr.bf16.mxu0 0
        %1106 = vmatpush1.bf16.msra.mxu0 0
        %1107 = vmatprep.subr.bf16.mxu0 0
        %1108 = vmatpush1.bf16.msra.mxu0 0
        %1109 = vmatprep.subr.bf16.mxu0 0
        %1110 = vmatpush1.bf16.msra.mxu0 0
        %1111 = vmatprep.subr.bf16.mxu0 0
        %1112 = vmatpush1.bf16.msra.mxu0 0
        %1113 = vmatprep.subr.bf16.mxu0 0
        %1114 = vmatpush1.bf16.msra.mxu0 0
        %1115 = vmatprep.subr.bf16.mxu0 0
        %1116 = vmatpush1.bf16.msra.mxu0 0
        %1117 = vmatprep.subr.bf16.mxu0 0
        %1118 = vmatpush1.bf16.msra.mxu0 0
        %1119 = vmatprep.subr.bf16.mxu0 0
        %1120 = vmatpush1.bf16.msra.mxu0 0
        %1121 = vmatprep.mubr.bf16.mxu0 0
        %1122 = vmatmul.mubr.bf16.gmra.mrb[0].mxu0 %v1087
        %v1123 = vpop.f32.mrb[0].mxu0
        %v1124 = vadd.f32 0.0, %v1123
        %v1125 = vpop.f32.mrb[0].mxu0
        %v1126 = vpop.f32.mrb[0].mxu0
        %v1127 = vadd.f32 0.0, %v1126
        %v1128 = vpop.f32.mrb[0].mxu0
        %1129 = vdwg.mxu0
        %v1130 = vadd.f32 %v851, %v1124
        %v1131 = vadd.f32 %v854, %v1127
        %1132 = vrot.lane.b32.xlu0 %v308, 80
        %v1133 = vpop.permute.xlu0 %1132
        %1134 = vrot.lane.b32.xlu0 %v308, 16
        %v1135 = vpop.permute.xlu0 %1134
        %v1137 = vsel %vm315, %v1133, 0
        %v1140 = vsel %vm315, %v1135, 0
        %1142 = vmatprep.subr.bf16.mxu0 0
        %1143 = vmatpush1.bf16.xpose.msra.mxu0 %v1140
        %1144 = vmatprep.subr.bf16.mxu0 0
        %1145 = vmatpush1.bf16.xpose.msra.mxu0 0
        %1146 = vmatprep.subr.bf16.mxu0 0
        %1147 = vmatpush1.bf16.xpose.msra.mxu0 0
        %1148 = vmatprep.subr.bf16.mxu0 0
        %1149 = vmatpush1.bf16.xpose.msra.mxu0 0
        %1150 = vmatprep.subr.bf16.mxu0 0
        %1151 = vmatpush1.bf16.xpose.msra.mxu0 0
        %1152 = vmatprep.subr.bf16.mxu0 0
        %1153 = vmatpush1.bf16.xpose.msra.mxu0 0
        %1154 = vmatprep.subr.bf16.mxu0 0
        %1155 = vmatpush1.bf16.xpose.msra.mxu0 0
        %1156 = vmatprep.subr.bf16.mxu0 0
        %1157 = vmatpush1.bf16.xpose.msra.mxu0 0
        %1158 = vmatprep.subr.bf16.mxu0 0
        %1159 = vmatpush1.bf16.xpose.msra.mxu0 0
        %1160 = vmatprep.subr.bf16.mxu0 0
        %1161 = vmatpush1.bf16.xpose.msra.mxu0 0
        %1162 = vmatprep.subr.bf16.mxu0 0
        %1163 = vmatpush1.bf16.xpose.msra.mxu0 0
        %1164 = vmatprep.subr.bf16.mxu0 0
        %1165 = vmatpush1.bf16.xpose.msra.mxu0 0
        %1166 = vmatprep.subr.bf16.mxu0 0
        %1167 = vmatpush1.bf16.xpose.msra.mxu0 0
        %1168 = vmatprep.subr.bf16.mxu0 0
        %1169 = vmatpush1.bf16.xpose.msra.mxu0 0
        %1170 = vmatprep.subr.bf16.mxu0 0
        %1171 = vmatpush1.bf16.xpose.msra.mxu0 0
        %1172 = vmatprep.subr.bf16.mxu0 0
        %1173 = vmatpush1.bf16.xpose.msra.mxu0 0
        %1174 = vmatprep.mubr.bf16.mxu0 0
        %1175 = vmatmul.mubr.bf16.gmra.mrb[0].mxu0 %v1137
        %v1176 = vpop.f32.mrb[0].mxu0
        %v1177 = vadd.f32 %v307, %v1176
        %v1178 = vpop.f32.mrb[0].mxu0
        %v1179 = vpop.f32.mrb[0].mxu0
        %v1180 = vpop.f32.mrb[0].mxu0
        %1181 = vdwg.mxu0
        %1182 = vrot.lane.b32.xlu0 %v309, 80
        %v1183 = vpop.permute.xlu0 %1182
        %1184 = vrot.lane.b32.xlu0 %v309, 16
        %v1185 = vpop.permute.xlu0 %1184
        %v1187 = vsel %vm315, %v1183, 0
        %v1190 = vsel %vm315, %v1185, 0
        %1192 = vmatprep.subr.bf16.mxu0 0
        %1193 = vmatpush1.bf16.xpose.msra.mxu0 %v1190
        %1194 = vmatprep.subr.bf16.mxu0 0
        %1195 = vmatpush1.bf16.xpose.msra.mxu0 0
        %1196 = vmatprep.subr.bf16.mxu0 0
        %1197 = vmatpush1.bf16.xpose.msra.mxu0 0
        %1198 = vmatprep.subr.bf16.mxu0 0
        %1199 = vmatpush1.bf16.xpose.msra.mxu0 0
        %1200 = vmatprep.subr.bf16.mxu0 0
        %1201 = vmatpush1.bf16.xpose.msra.mxu0 0
        %1202 = vmatprep.subr.bf16.mxu0 0
        %1203 = vmatpush1.bf16.xpose.msra.mxu0 0
        %1204 = vmatprep.subr.bf16.mxu0 0
        %1205 = vmatpush1.bf16.xpose.msra.mxu0 0
        %1206 = vmatprep.subr.bf16.mxu0 0
        %1207 = vmatpush1.bf16.xpose.msra.mxu0 0
        %1208 = vmatprep.subr.bf16.mxu0 0
        %1209 = vmatpush1.bf16.xpose.msra.mxu0 0
        %1210 = vmatprep.subr.bf16.mxu0 0
        %1211 = vmatpush1.bf16.xpose.msra.mxu0 0
        %1212 = vmatprep.subr.bf16.mxu0 0
        %1213 = vmatpush1.bf16.xpose.msra.mxu0 0
        %1214 = vmatprep.subr.bf16.mxu0 0
        %1215 = vmatpush1.bf16.xpose.msra.mxu0 0
        %1216 = vmatprep.subr.bf16.mxu0 0
        %1217 = vmatpush1.bf16.xpose.msra.mxu0 0
        %1218 = vmatprep.subr.bf16.mxu0 0
        %1219 = vmatpush1.bf16.xpose.msra.mxu0 0
        %1220 = vmatprep.subr.bf16.mxu0 0
        %1221 = vmatpush1.bf16.xpose.msra.mxu0 0
        %1222 = vmatprep.subr.bf16.mxu0 0
        %1223 = vmatpush1.bf16.xpose.msra.mxu0 0
        %1224 = vmatprep.mubr.bf16.mxu0 0
        %1225 = vmatmul.mubr.bf16.gmra.mrb[0].mxu0 %v1187
        %v1226 = vpop.f32.mrb[0].mxu0
        %v1227 = vadd.f32 %v307, %v1226
        %v1228 = vpop.f32.mrb[0].mxu0
        %v1229 = vpop.f32.mrb[0].mxu0
        %v1230 = vpop.f32.mrb[0].mxu0
        %1231 = vdwg.mxu0
        %v1232 = vsel %vm411, %v1177, -inf
        %1233 = vmax.xlane.f32.xlu0 %v1232
        %v1234 = vpop.xlane.xlu0 %1233
        %v1235 = vsel %vm411, %v1227, -inf
        %1236 = vmax.xlane.f32.xlu0 %v1235
        %v1237 = vpop.xlane.xlu0 %1236
        %v1238 = vsub.f32 %v1177, %v1234
        %v1239 = vsub.f32 %v1227, %v1237
        %v1240 = vmul.f32 %v1238, 1.442695
        %v1241 = vpow.pop %v1240
        %v1242 = vmul.f32 %v1239, 1.442695
        %v1243 = vpow.pop %v1242
        %v1244 = vsel %vm411, %v1241, 0.0
        %1245 = vadd.xlane.f32.xlu0 %v1244
        %v1246 = vpop.xlane.xlu0 %1245
        %v1247 = vsel %vm411, %v1243, 0.0
        %1248 = vadd.xlane.f32.xlu0 %v1247
        %v1249 = vpop.xlane.xlu0 %1248
        %v1250 = vrcp.pop %v1246
        %v1251 = vrcp.pop %v1249
        %v1252 = vmul.f32 %v1241, %v1250
        %v1253 = vmul.f32 %v1243, %v1251
        %v1254 = vpack.c.bf16 %v1252, %v1252
        %v1255 = vpack.c.bf16 %v1253, %v1253
        %1256 = vrot.lane.b32.xlu0 %v310, 80
        %v1257 = vpop.permute.xlu0 %1256
        %v1259 = vsel %vm411, %v1254, 0
        %v1262 = vsel %vm439, %v1257, 0
        %1264 = vmatprep.subr.bf16.mxu0 0
        %1265 = vmatpush1.bf16.msra.mxu0 %v1262
        %1266 = vmatprep.subr.bf16.mxu0 0
        %1267 = vmatpush1.bf16.msra.mxu0 0
        %1268 = vmatprep.subr.bf16.mxu0 0
        %1269 = vmatpush1.bf16.msra.mxu0 0
        %1270 = vmatprep.subr.bf16.mxu0 0
        %1271 = vmatpush1.bf16.msra.mxu0 0
        %1272 = vmatprep.subr.bf16.mxu0 0
        %1273 = vmatpush1.bf16.msra.mxu0 0
        %1274 = vmatprep.subr.bf16.mxu0 0
        %1275 = vmatpush1.bf16.msra.mxu0 0
        %1276 = vmatprep.subr.bf16.mxu0 0
        %1277 = vmatpush1.bf16.msra.mxu0 0
        %1278 = vmatprep.subr.bf16.mxu0 0
        %1279 = vmatpush1.bf16.msra.mxu0 0
        %1280 = vmatprep.subr.bf16.mxu0 0
        %1281 = vmatpush1.bf16.msra.mxu0 0
        %1282 = vmatprep.subr.bf16.mxu0 0
        %1283 = vmatpush1.bf16.msra.mxu0 0
        %1284 = vmatprep.subr.bf16.mxu0 0
        %1285 = vmatpush1.bf16.msra.mxu0 0
        %1286 = vmatprep.subr.bf16.mxu0 0
        %1287 = vmatpush1.bf16.msra.mxu0 0
        %1288 = vmatprep.subr.bf16.mxu0 0
        %1289 = vmatpush1.bf16.msra.mxu0 0
        %1290 = vmatprep.subr.bf16.mxu0 0
        %1291 = vmatpush1.bf16.msra.mxu0 0
        %1292 = vmatprep.subr.bf16.mxu0 0
        %1293 = vmatpush1.bf16.msra.mxu0 0
        %1294 = vmatprep.subr.bf16.mxu0 0
        %1295 = vmatpush1.bf16.msra.mxu0 0
        %1296 = vmatprep.mubr.bf16.mxu0 0
        %1297 = vmatmul.mubr.bf16.gmra.mrb[0].mxu0 %v1259
        %v1298 = vpop.f32.mrb[0].mxu0
        %v1299 = vadd.f32 0.0, %v1298
        %v1300 = vpop.f32.mrb[0].mxu0
        %v1301 = vpop.f32.mrb[0].mxu0
        %v1302 = vpop.f32.mrb[0].mxu0
        %1303 = vdwg.mxu0
        %1304 = vrot.lane.b32.xlu0 %v311, 80
        %v1305 = vpop.permute.xlu0 %1304
        %v1307 = vsel %vm411, %v1255, 0
        %v1310 = vsel %vm439, %v1305, 0
        %1312 = vmatprep.subr.bf16.mxu0 0
        %1313 = vmatpush1.bf16.msra.mxu0 %v1310
        %1314 = vmatprep.subr.bf16.mxu0 0
        %1315 = vmatpush1.bf16.msra.mxu0 0
        %1316 = vmatprep.subr.bf16.mxu0 0
        %1317 = vmatpush1.bf16.msra.mxu0 0
        %1318 = vmatprep.subr.bf16.mxu0 0
        %1319 = vmatpush1.bf16.msra.mxu0 0
        %1320 = vmatprep.subr.bf16.mxu0 0
        %1321 = vmatpush1.bf16.msra.mxu0 0
        %1322 = vmatprep.subr.bf16.mxu0 0
        %1323 = vmatpush1.bf16.msra.mxu0 0
        %1324 = vmatprep.subr.bf16.mxu0 0
        %1325 = vmatpush1.bf16.msra.mxu0 0
        %1326 = vmatprep.subr.bf16.mxu0 0
        %1327 = vmatpush1.bf16.msra.mxu0 0
        %1328 = vmatprep.subr.bf16.mxu0 0
        %1329 = vmatpush1.bf16.msra.mxu0 0
        %1330 = vmatprep.subr.bf16.mxu0 0
        %1331 = vmatpush1.bf16.msra.mxu0 0
        %1332 = vmatprep.subr.bf16.mxu0 0
        %1333 = vmatpush1.bf16.msra.mxu0 0
        %1334 = vmatprep.subr.bf16.mxu0 0
        %1335 = vmatpush1.bf16.msra.mxu0 0
        %1336 = vmatprep.subr.bf16.mxu0 0
        %1337 = vmatpush1.bf16.msra.mxu0 0
        %1338 = vmatprep.subr.bf16.mxu0 0
        %1339 = vmatpush1.bf16.msra.mxu0 0
        %1340 = vmatprep.subr.bf16.mxu0 0
        %1341 = vmatpush1.bf16.msra.mxu0 0
        %1342 = vmatprep.subr.bf16.mxu0 0
        %1343 = vmatpush1.bf16.msra.mxu0 0
        %1344 = vmatprep.mubr.bf16.mxu0 0
        %1345 = vmatmul.mubr.bf16.gmra.mrb[0].mxu0 %v1307
        %v1346 = vpop.f32.mrb[0].mxu0
        %v1347 = vadd.f32 0.0, %v1346
        %v1348 = vpop.f32.mrb[0].mxu0
        %v1349 = vpop.f32.mrb[0].mxu0
        %v1350 = vpop.f32.mrb[0].mxu0
        %1351 = vdwg.mxu0
        %v1352 = vpack.c.bf16 %v1347, %v1299
        %v1353 = vld [vmem:[%s2 + $0x18] sm:$0xf]
        %v1354 = vld [vmem:[%s2 + $0x1c] sm:$0xf]
        %v1357 = vunpack.c.l.b16 %v1353
        %v1358 = vunpack.c.l.b16 %v1354
        %v1359 = vpack.c.b16 %v1358, %v1357
        %v1362 = vsel %vm315, %v1352, 0
        %1364 = vmatprep.subr.bf16.mxu0 0
        %1365 = vmatpush1.bf16.msra.mxu0 %v1359
        %1366 = vmatprep.subr.bf16.mxu0 0
        %1367 = vmatpush1.bf16.msra.mxu0 0
        %1368 = vmatprep.subr.bf16.mxu0 0
        %1369 = vmatpush1.bf16.msra.mxu0 0
        %1370 = vmatprep.subr.bf16.mxu0 0
        %1371 = vmatpush1.bf16.msra.mxu0 0
        %1372 = vmatprep.subr.bf16.mxu0 0
        %1373 = vmatpush1.bf16.msra.mxu0 0
        %1374 = vmatprep.subr.bf16.mxu0 0
        %1375 = vmatpush1.bf16.msra.mxu0 0
        %1376 = vmatprep.subr.bf16.mxu0 0
        %1377 = vmatpush1.bf16.msra.mxu0 0
        %1378 = vmatprep.subr.bf16.mxu0 0
        %1379 = vmatpush1.bf16.msra.mxu0 0
        %1380 = vmatprep.subr.bf16.mxu0 0
        %1381 = vmatpush1.bf16.msra.mxu0 0
        %1382 = vmatprep.subr.bf16.mxu0 0
        %1383 = vmatpush1.bf16.msra.mxu0 0
        %1384 = vmatprep.subr.bf16.mxu0 0
        %1385 = vmatpush1.bf16.msra.mxu0 0
        %1386 = vmatprep.subr.bf16.mxu0 0
        %1387 = vmatpush1.bf16.msra.mxu0 0
        %1388 = vmatprep.subr.bf16.mxu0 0
        %1389 = vmatpush1.bf16.msra.mxu0 0
        %1390 = vmatprep.subr.bf16.mxu0 0
        %1391 = vmatpush1.bf16.msra.mxu0 0
        %1392 = vmatprep.subr.bf16.mxu0 0
        %1393 = vmatpush1.bf16.msra.mxu0 0
        %1394 = vmatprep.subr.bf16.mxu0 0
        %1395 = vmatpush1.bf16.msra.mxu0 0
        %1396 = vmatprep.mubr.bf16.mxu0 0
        %1397 = vmatmul.mubr.bf16.gmra.mrb[0].mxu0 %v1362
        %v1398 = vpop.f32.mrb[0].mxu0
        %v1399 = vadd.f32 0.0, %v1398
        %v1400 = vpop.f32.mrb[0].mxu0
        %v1401 = vpop.f32.mrb[0].mxu0
        %v1402 = vadd.f32 0.0, %v1401
        %v1403 = vpop.f32.mrb[0].mxu0
        %1404 = vdwg.mxu0
        %v1405 = vadd.f32 %v1130, %v1399
        %v1406 = vadd.f32 %v1131, %v1402
        %v1407 = vld [vmem:[%s3] sm:$0x1]
        %v1409 = vlaneseq
        %v1410 = vshrl.u32 %v1409, 7
        %v1411 = vsub.s32 0, %v1410
        %v1412 = vrot.slane %v1407, %v1411
        %v1414 = vadd.f32 %v1405, %v1412
        %v1415 = vadd.f32 %v1406, %v1412
        %1416 = vst.msk [vmem:[%s191] sm:$0xff] %vm255, %v1414
        %1417 = vst.msk [vmem:[%s191 + $0x8] sm:$0xff] %vm255, %v1415
        %s1418 = sand.u32 %s115, 1
        %s1419 = scalar_lea.sflag [#allocation3], %s1418
        %s1420 = sand.u32 %s115, 1
        %s1421 = smul.addr %s1420, 16
        %s1422 = scalar_lea.vmem [#allocation2], %s1421
        // Predicated region
        $region37: #{mha_forward.1} parent=35 // pred_check
          %p1423 = pneg %p125
        $region38: #{mha_forward.1} parent=35 // pred_check_branch
          %1425 = sbr.rel (%p1423) target = $region40
        $region39: #{mha_forward.1} parent=35 // pred_region
          %s1426 = smul.u32 2, %s18
          %s1428 = ssub.s32 256, 256
          %1429 = vsyncadd %s1419, %s1428
          %s1430 = smul.addr %s1426, 128
          %s1431 = scalar_lea.hbm %s4, %s1430
          %s1432 = sshll.u32 %s1422, 4
          %s1433 = int_to_ptr.vmem [resolvable:$true] %s1432
          %1438 = dma.vmem_to_hbm [thread:$0]  %s1433, 256, %s1431, %s1419, 128, 128, 8
        $region40: #{mha_forward.1} parent=35 // pred_fallthru
          _
      $region36: #{mha_forward.1} parent=5 // pred_fallthru
        _
      %p1439 = scmp.le.s32.totalorder 2, %s13
      // Predicated region
      $region41: #{mha_forward.1} parent=5 // pred_check
        %p1440 = pneg %p1439
      $region42: #{mha_forward.1} parent=5 // pred_check_branch
        %1442 = sbr.rel (%p1440) target = $region44
      $region43: #{mha_forward.1} parent=5 // pred_region
        %s1443 = ssub.s32 %s13, 2
        // Predicated region
        $region45: #{mha_forward.1} parent=43 // pred_check
          %p1444 = pneg %p131
        $region46: #{mha_forward.1} parent=43 // pred_check_branch
          %1446 = sbr.rel (%p1444) target = $region48
        $region47: #{mha_forward.1} parent=43 // pred_region
          %s1447 = sand.u32 %s116, 1
          %s1448 = scalar_lea.sflag [#allocation3], %s1447
          %s1449 = sand.u32 %s116, 1
          %s1450 = smul.addr %s1449, 16
          %s1451 = scalar_lea.vmem [#allocation2], %s1450
          %1452 = dma.done %s1448, 256
        $region48: #{mha_forward.1} parent=43 // pred_fallthru
          _
      $region44: #{mha_forward.1} parent=5 // pred_fallthru
        _
    $region6: #{mha_forward.1} parent=1 // loop_footer
      %s17 = sadd.s32 1, %s13
    $region7: #{mha_forward.1} parent=1 // loop_footer_branch
      %12 = sbr.rel target = $region3
    $region8: #{mha_forward.1} parent=1 // loop_exit
      _
    %1453 = vsyncpa [#allocation3], 1
    %s1454 = scalar_lea.sflag [#allocation3], 1
    %1455 = vsyncpa %s1454, 1

</llo_original>
